<compile_context>
chip_gen: v6e
topology: v6e:2x2x1
jax: 0.10.0
libtpu: 0.0.40
codegen_flags: <defaults>
</compile_context>

<pallas_src>
import functools
import numpy as np
import jax
import jax.numpy as jnp
from jax import lax
from jax.experimental import pallas as pl
from jax.experimental.pallas import tpu as pltpu

N_OSC = 5
OSC_PAD = 8          # padded oscillator / agent width
A_PAD = 8
N_ANG = 360
ANG_PAD = 384        # 3 * 128 lanes

# Row layout of the single packed (BLK_ROWS, 8) f32 input block.
ROW_PHASES = 0       # oscillator phases, row layout (lanes 0..4)
ROW_CONST = 1        # 2*pi*frequency + new_input, row layout
ROW_ANGLES = 2       # other-agent heading angles (lanes 0..n_agents-1)
ROW_AMASK = 3        # 1.0 for real agents, 0.0 for padding
ROW_WP = 8           # rows  8..15 : in-phase coupling matrix W       (symmetric)
ROW_WA = 16          # rows 16..23 : anti-phase coupling matrix W / k (symmetric)
ROW_DMT = 24         # rows 24..31 : inter-agent distances, transposed
ROW_PCOL = 32        # rows 32..39 : lane 0 = oscillator phases, column layout
ROW_CCOL = 40        # rows 40..47 : lane 0 = (2*pi*f + input), column layout
BLK_ROWS = 48


def _social_guido_kernel(blk_ref, probs_ref, newp_ref, *,
                         agent_id, coupling, coupling_anti, decay, inv_fs):
    # ---- unpack the packed block (static slices) ----
    p_row0 = blk_ref[ROW_PHASES:ROW_PHASES + 1, :]              # (1, 8)
    c_row0 = blk_ref[ROW_CONST:ROW_CONST + 1, :]                # (1, 8)
    ang_row = blk_ref[ROW_ANGLES:ROW_ANGLES + 1, :]             # (1, 8)
    amask = blk_ref[ROW_AMASK:ROW_AMASK + 1, :]                 # (1, 8)
    wp = blk_ref[ROW_WP:ROW_WP + OSC_PAD, :]                    # (8, 8)
    wa = blk_ref[ROW_WA:ROW_WA + OSC_PAD, :]                    # (8, 8)
    # distances[i] = inter_agent_distances[i, agent_id]  (static row of the
    # transposed matrix -> no one-hot matvec, no reduce)
    dist_row = blk_ref[ROW_DMT + agent_id:ROW_DMT + agent_id + 1, :]   # (1, 8)
    p_col0 = blk_ref[ROW_PCOL:ROW_PCOL + OSC_PAD, :][:, 0:1]    # (8, 1)
    c_col0 = blk_ref[ROW_CCOL:ROW_CCOL + OSC_PAD, :][:, 0:1]    # (8, 1)

    lane8 = lax.broadcasted_iota(jnp.int32, (1, OSC_PAD), 1)
    sub8 = lax.broadcasted_iota(jnp.int32, (OSC_PAD, 1), 0)

    # ---- social influence (phase independent -> folded into the RK constant) ----
    self_ang = jnp.sum(ang_row * jnp.where(lane8 == agent_id, 1.0, 0.0))
    env = jnp.exp(-decay * dist_row) * amask                    # (1, 8)
    d = self_ang - ang_row
    s = (coupling * jnp.sum(env * jnp.sin(d))
         + coupling_anti * jnp.sum(env * jnp.sin(2.0 * d)))
    # only oscillator 4 receives the social term
    c_row = c_row0 - jnp.where(lane8 == 4, s, 0.0)              # (1, 8)
    c_col = c_col0 - jnp.where(sub8 == 4, s, 0.0)               # (8, 1)

    # ---- HKB right-hand side (VPU/XLU only, no MXU, no transpose) ----
    def rk_rhs(p_row, p_col):
        dm = p_col - p_row                                      # D[i,j] = p_i - p_j
        m = wp * jnp.sin(dm) + wa * jnp.sin(2.0 * dm)           # antisymmetric
        mut_row = -jnp.sum(m, axis=0, keepdims=True)            # (1, 8)
        mut_col = jnp.sum(m, axis=1, keepdims=True)             # (8, 1)
        return inv_fs * (c_row - mut_row), inv_fs * (c_col - mut_col)

    # ---- RK4 step (SocialFullStepLayer) ----
    k1r, k1c = rk_rhs(p_row0, p_col0)
    k2r, k2c = rk_rhs(p_row0 + 0.5 * k1r, p_col0 + 0.5 * k1c)
    k3r, k3c = rk_rhs(p_row0 + 0.5 * k2r, p_col0 + 0.5 * k2c)
    k4r, _ = rk_rhs(p_row0 + k3r, p_col0 + k3c)
    new_p = p_row0 + (1.0 / 6.0) * (k1r + 2.0 * k2r + 2.0 * k3r + k4r)
    newp_ref[...] = new_p

    # output_angle = phases[2] - phases[3] (after the update)
    sel = jnp.where(lane8 == 2, 1.0, 0.0) - jnp.where(lane8 == 3, 1.0, 0.0)
    out_ang = jnp.sum(new_p * sel)

    # ---- probability over 360 headings + softmax ----
    # grid[j] = -pi + j*2pi/359  =>  out_ang - pi - grid[j] = out_ang - j*step
    ang_iota = lax.broadcasted_iota(jnp.int32, (1, ANG_PAD), 1)
    grid = ang_iota.astype(jnp.float32) * np.float32(2.0 * np.pi / (N_ANG - 1))
    logits = np.float32(1.0 / (2.0 * np.pi)) * (1.0 - jnp.cos(out_ang - grid))
    # logits bounded in [0, 1/pi]: exp cannot overflow, no max-subtraction needed;
    # padded lanes are zeroed multiplicatively.
    e = jnp.where(ang_iota < N_ANG, jnp.exp(logits), 0.0)
    ssum = jnp.sum(e, axis=1, keepdims=True)                    # (1, 1)
    inv = pl.reciprocal(ssum, approx=True)
    inv = inv * (2.0 - ssum * inv)                              # one Newton refinement
    probs_ref[...] = e * inv


def make_social_guido(fs, frequency, phase_coupling, k, agent_coupling,
                      social_weight_decay_rate, n_agents, agent_id):
    """Returns a jitted single-step forward:
       (phases (5,), input (1,2), angles (1,n), distances (1,n,n))
         -> (probs (1,360), new_phases (5,)).
    All static configuration is baked into the kernel / packing template."""
    frequency = np.asarray(frequency, np.float32)
    pc = np.asarray(phase_coupling, np.float32)
    k = float(k)
    fs = float(fs)

    freq_array = np.array([frequency[0], frequency[0], frequency[1],
                           frequency[1], frequency[2]], np.float32)
    (a_sens, a_ips_l, a_ips_r, a_con_l, a_con_r,
     a_motor, a_ss_l, a_ss_r, a_sm_l, a_sm_r) = [float(v) for v in pc]
    w_phase = np.array(
        [[0.0,     a_sens,  a_ips_l, a_con_l, a_ss_l],
         [a_sens,  0.0,     a_con_r, a_ips_r, a_ss_r],
         [a_ips_l, a_con_r, 0.0,     a_motor, a_sm_l],
         [a_con_l, a_ips_r, a_motor, 0.0,     a_sm_r],
         [a_ss_l,  a_ss_r,  a_sm_l,  a_sm_r,  0.0]], np.float32)
    w_anti = w_phase / np.float32(k)

    # Static packing template (everything not depending on per-call inputs).
    template = np.zeros((BLK_ROWS, OSC_PAD), np.float32)
    template[ROW_CONST, :N_OSC] = 2.0 * np.pi * freq_array
    template[ROW_AMASK, :n_agents] = 1.0
    template[ROW_WP:ROW_WP + N_OSC, :N_OSC] = w_phase
    template[ROW_WA:ROW_WA + N_OSC, :N_OSC] = w_anti
    template[ROW_CCOL:ROW_CCOL + N_OSC, 0] = 2.0 * np.pi * freq_array
    template = jnp.asarray(template)

    kernel = functools.partial(
        _social_guido_kernel,
        agent_id=int(agent_id),
        coupling=float(agent_coupling),
        coupling_anti=float(agent_coupling) / k,
        decay=float(social_weight_decay_rate),
        inv_fs=1.0 / fs)

    call = pl.pallas_call(
        kernel,
        out_shape=(jax.ShapeDtypeStruct((1, ANG_PAD), jnp.float32),
                   jax.ShapeDtypeStruct((1, OSC_PAD), jnp.float32)),
        in_specs=[pl.BlockSpec(memory_space=pltpu.MemorySpace.VMEM)],
        out_specs=(pl.BlockSpec(memory_space=pltpu.MemorySpace.VMEM),
                   pl.BlockSpec(memory_space=pltpu.MemorySpace.VMEM)),
    )

    @jax.jit
    def step(phases, inp, angles, inter_agent_distances):
        phases = jnp.reshape(jnp.asarray(phases, jnp.float32), (N_OSC,))
        inp2 = jnp.reshape(jnp.asarray(inp, jnp.float32), (-1,))[:2]
        angles_v = jnp.reshape(jnp.asarray(angles, jnp.float32), (n_agents,))
        dists = jnp.reshape(jnp.asarray(inter_agent_distances, jnp.float32),
                            (n_agents, n_agents))

        blk = template
        blk = blk.at[ROW_PHASES, :N_OSC].set(phases)
        blk = blk.at[ROW_CONST, 0:2].add(inp2)
        blk = blk.at[ROW_ANGLES, :n_agents].set(angles_v)
        blk = blk.at[ROW_DMT:ROW_DMT + n_agents, :n_agents].set(dists.T)
        blk = blk.at[ROW_PCOL:ROW_PCOL + N_OSC, 0].set(phases)
        blk = blk.at[ROW_CCOL:ROW_CCOL + 2, 0].add(inp2)

        probs_pad, newp_pad = call(blk)
        return probs_pad[:, :N_ANG], newp_pad[0, :N_OSC]

    return step


if __name__ == "__main__":
    key = jax.random.PRNGKey(0)
    k_in, k_ang, k_dst = jax.random.split(key, 3)

    # Small deterministic configuration
    n_agents = 4
    agent_id = 1
    fs = 50.0
    frequency = np.array([1.0, 2.5, 1.5], dtype=np.float32)       # [sens, motor, social]
    phase_coupling = np.array([0.5, 0.3, 0.3, 0.2, 0.2,
                               0.4, 0.1, 0.1, 0.05, 0.05], dtype=np.float32)
    k = 2.0
    agent_coupling = 0.8
    social_weight_decay_rate = 0.1

    step = make_social_guido(fs, frequency, phase_coupling, k, agent_coupling,
                             social_weight_decay_rate, n_agents, agent_id)

    phases0 = jnp.zeros((N_OSC,), jnp.float32)                     # self.phases
    state = jax.random.uniform(k_in, (1, 2), jnp.float32)          # squeezed -> input[0:2]
    angles = jax.random.uniform(k_ang, (1, n_agents), jnp.float32,
                                minval=-np.pi, maxval=np.pi)
    inter_agent_distances = jax.random.uniform(k_dst, (1, n_agents, n_agents),
                                               jnp.float32, minval=0.0, maxval=5.0)

    probs, new_phases = step(phases0, state, angles, inter_agent_distances)
    probs = jax.block_until_ready(probs)
    new_phases = jax.block_until_ready(new_phases)

    assert probs.shape == (1, N_ANG)
    assert new_phases.shape == (N_OSC,)
    assert bool(jnp.all(jnp.isfinite(probs))) and bool(jnp.all(jnp.isfinite(new_phases)))
    assert abs(float(jnp.sum(probs)) - 1.0) < 1e-3

    print("KERNEL_OK")
</pallas_src>

<mosaic_0001>
module attributes {stable_mosaic.version = 11 : i64} {
  func.func @_social_guido_kernel(%arg0: memref<48x8xf32, #tpu.memory_space<vmem>>, %arg1: memref<1x384xf32, #tpu.memory_space<vmem>>, %arg2: memref<1x8xf32, #tpu.memory_space<vmem>>) attributes {dimension_semantics = [], scalar_prefetch = 0 : i64, scratch_operands = 0 : i64, tpu.core_type = #tpu.core_type<tc>} {
    %c0 = arith.constant 0 : index
    %c0_0 = arith.constant 0 : index
    %0 = vector.load %arg0[%c0, %c0_0] : memref<48x8xf32, #tpu.memory_space<vmem>>, vector<1x8xf32>
    %c1 = arith.constant 1 : index
    %c0_1 = arith.constant 0 : index
    %1 = vector.load %arg0[%c1, %c0_1] : memref<48x8xf32, #tpu.memory_space<vmem>>, vector<1x8xf32>
    %c2 = arith.constant 2 : index
    %c0_2 = arith.constant 0 : index
    %2 = vector.load %arg0[%c2, %c0_2] : memref<48x8xf32, #tpu.memory_space<vmem>>, vector<1x8xf32>
    %c3 = arith.constant 3 : index
    %c0_3 = arith.constant 0 : index
    %3 = vector.load %arg0[%c3, %c0_3] : memref<48x8xf32, #tpu.memory_space<vmem>>, vector<1x8xf32>
    %c8 = arith.constant 8 : index
    %c0_4 = arith.constant 0 : index
    %4 = vector.load %arg0[%c8, %c0_4] : memref<48x8xf32, #tpu.memory_space<vmem>>, vector<8x8xf32>
    %c16 = arith.constant 16 : index
    %c0_5 = arith.constant 0 : index
    %5 = vector.load %arg0[%c16, %c0_5] : memref<48x8xf32, #tpu.memory_space<vmem>>, vector<8x8xf32>
    %c25 = arith.constant 25 : index
    %c0_6 = arith.constant 0 : index
    %6 = vector.load %arg0[%c25, %c0_6] : memref<48x8xf32, #tpu.memory_space<vmem>>, vector<1x8xf32>
    %c32 = arith.constant 32 : index
    %c0_7 = arith.constant 0 : index
    %7 = vector.load %arg0[%c32, %c0_7] : memref<48x8xf32, #tpu.memory_space<vmem>>, vector<8x8xf32>
    %8 = vector.extract_strided_slice %7 {offsets = [0, 0], sizes = [8, 1], strides = [1, 1]} : vector<8x8xf32> to vector<8x1xf32>
    %c40 = arith.constant 40 : index
    %c0_8 = arith.constant 0 : index
    %9 = vector.load %arg0[%c40, %c0_8] : memref<48x8xf32, #tpu.memory_space<vmem>>, vector<8x8xf32>
    %10 = vector.extract_strided_slice %9 {offsets = [0, 0], sizes = [8, 1], strides = [1, 1]} : vector<8x8xf32> to vector<8x1xf32>
    %11 = tpu.iota {dimensions = array<i32: 1>} : vector<1x8xi32>
    %12 = tpu.iota {dimensions = array<i32: 0>} : vector<8x1xi32>
    %c1_i32 = arith.constant 1 : i32
    %13 = vector.broadcast %c1_i32 : i32 to vector<1x8xi32>
    %14 = arith.cmpi eq, %11, %13 : vector<1x8xi32>
    %cst = arith.constant 1.000000e+00 : f32
    %cst_9 = arith.constant 0.000000e+00 : f32
    %15 = vector.broadcast %cst : f32 to vector<1x8xf32>
    %16 = vector.broadcast %cst_9 : f32 to vector<1x8xf32>
    %17 = arith.select %14, %15, %16 : vector<1x8xi1>, vector<1x8xf32>
    %18 = arith.mulf %2, %17 : vector<1x8xf32>
    %19 = vector.shape_cast %18 : vector<1x8xf32> to vector<1x1x8xf32>
    %cst_10 = arith.constant dense<0.000000e+00> : vector<1xf32>
    %20 = vector.multi_reduction <add>, %19, %cst_10 [1, 2] : vector<1x1x8xf32> to vector<1xf32>
    %21 = vector.shape_cast %20 : vector<1xf32> to vector<1x1x1xf32>
    %22 = vector.extract %21[0, 0, 0] : f32 from vector<1x1x1xf32>
    %cst_11 = arith.constant -1.000000e-01 : f32
    %23 = vector.broadcast %cst_11 : f32 to vector<1x8xf32>
    %24 = arith.mulf %23, %6 : vector<1x8xf32>
    %25 = math.exp %24 : vector<1x8xf32>
    %26 = arith.mulf %25, %3 : vector<1x8xf32>
    %27 = vector.broadcast %22 : f32 to vector<1x8xf32>
    %28 = arith.subf %27, %2 : vector<1x8xf32>
    %29 = math.sin %28 : vector<1x8xf32>
    %30 = arith.mulf %26, %29 : vector<1x8xf32>
    %31 = vector.shape_cast %30 : vector<1x8xf32> to vector<1x1x8xf32>
    %cst_12 = arith.constant dense<0.000000e+00> : vector<1xf32>
    %32 = vector.multi_reduction <add>, %31, %cst_12 [1, 2] : vector<1x1x8xf32> to vector<1xf32>
    %33 = vector.shape_cast %32 : vector<1xf32> to vector<1x1x1xf32>
    %34 = vector.extract %33[0, 0, 0] : f32 from vector<1x1x1xf32>
    %cst_13 = arith.constant 8.000000e-01 : f32
    %35 = arith.mulf %cst_13, %34 : f32
    %cst_14 = arith.constant 2.000000e+00 : f32
    %36 = vector.broadcast %cst_14 : f32 to vector<1x8xf32>
    %37 = arith.mulf %36, %28 : vector<1x8xf32>
    %38 = math.sin %37 : vector<1x8xf32>
    %39 = arith.mulf %26, %38 : vector<1x8xf32>
    %40 = vector.shape_cast %39 : vector<1x8xf32> to vector<1x1x8xf32>
    %cst_15 = arith.constant dense<0.000000e+00> : vector<1xf32>
    %41 = vector.multi_reduction <add>, %40, %cst_15 [1, 2] : vector<1x1x8xf32> to vector<1xf32>
    %42 = vector.shape_cast %41 : vector<1xf32> to vector<1x1x1xf32>
    %43 = vector.extract %42[0, 0, 0] : f32 from vector<1x1x1xf32>
    %cst_16 = arith.constant 4.000000e-01 : f32
    %44 = arith.mulf %cst_16, %43 : f32
    %45 = arith.addf %35, %44 : f32
    %c4_i32 = arith.constant 4 : i32
    %46 = vector.broadcast %c4_i32 : i32 to vector<1x8xi32>
    %47 = arith.cmpi eq, %11, %46 : vector<1x8xi32>
    %cst_17 = arith.constant 0.000000e+00 : f32
    %48 = vector.broadcast %45 : f32 to vector<1x8xf32>
    %49 = vector.broadcast %cst_17 : f32 to vector<1x8xf32>
    %50 = arith.select %47, %48, %49 : vector<1x8xi1>, vector<1x8xf32>
    %51 = arith.subf %1, %50 : vector<1x8xf32>
    %c4_i32_18 = arith.constant 4 : i32
    %52 = vector.broadcast %c4_i32_18 : i32 to vector<8x1xi32>
    %53 = arith.cmpi eq, %12, %52 : vector<8x1xi32>
    %cst_19 = arith.constant 0.000000e+00 : f32
    %54 = vector.broadcast %45 : f32 to vector<8x1xf32>
    %55 = vector.broadcast %cst_19 : f32 to vector<8x1xf32>
    %56 = arith.select %53, %54, %55 : vector<8x1xi1>, vector<8x1xf32>
    %57 = arith.subf %10, %56 : vector<8x1xf32>
    %58 = vector.broadcast %8 : vector<8x1xf32> to vector<8x8xf32>
    %59 = vector.broadcast %0 : vector<1x8xf32> to vector<8x8xf32>
    %60 = arith.subf %58, %59 : vector<8x8xf32>
    %61 = math.sin %60 : vector<8x8xf32>
    %62 = arith.mulf %4, %61 : vector<8x8xf32>
    %cst_20 = arith.constant 2.000000e+00 : f32
    %63 = vector.broadcast %cst_20 : f32 to vector<8x8xf32>
    %64 = arith.mulf %63, %60 : vector<8x8xf32>
    %65 = math.sin %64 : vector<8x8xf32>
    %66 = arith.mulf %5, %65 : vector<8x8xf32>
    %67 = arith.addf %62, %66 : vector<8x8xf32>
    %cst_21 = arith.constant dense<0.000000e+00> : vector<8xf32>
    %68 = vector.multi_reduction <add>, %67, %cst_21 [0] : vector<8x8xf32> to vector<8xf32>
    %69 = vector.shape_cast %68 : vector<8xf32> to vector<1x8xf32>
    %cst_22 = arith.constant 0.000000e+00 : f32
    %70 = vector.broadcast %cst_22 : f32 to vector<1x8xf32>
    %71 = arith.subf %70, %69 : vector<1x8xf32>
    %cst_23 = arith.constant dense<0.000000e+00> : vector<8xf32>
    %72 = vector.multi_reduction <add>, %67, %cst_23 [1] : vector<8x8xf32> to vector<8xf32>
    %73 = vector.shape_cast %72 : vector<8xf32> to vector<8x1xf32>
    %74 = arith.subf %51, %71 : vector<1x8xf32>
    %cst_24 = arith.constant 2.000000e-02 : f32
    %75 = vector.broadcast %cst_24 : f32 to vector<1x8xf32>
    %76 = arith.mulf %75, %74 : vector<1x8xf32>
    %77 = arith.subf %57, %73 : vector<8x1xf32>
    %cst_25 = arith.constant 2.000000e-02 : f32
    %78 = vector.broadcast %cst_25 : f32 to vector<8x1xf32>
    %79 = arith.mulf %78, %77 : vector<8x1xf32>
    %cst_26 = arith.constant 5.000000e-01 : f32
    %80 = vector.broadcast %cst_26 : f32 to vector<1x8xf32>
    %81 = arith.mulf %80, %76 : vector<1x8xf32>
    %82 = arith.addf %0, %81 : vector<1x8xf32>
    %cst_27 = arith.constant 5.000000e-01 : f32
    %83 = vector.broadcast %cst_27 : f32 to vector<8x1xf32>
    %84 = arith.mulf %83, %79 : vector<8x1xf32>
    %85 = arith.addf %8, %84 : vector<8x1xf32>
    %86 = vector.broadcast %85 : vector<8x1xf32> to vector<8x8xf32>
    %87 = vector.broadcast %82 : vector<1x8xf32> to vector<8x8xf32>
    %88 = arith.subf %86, %87 : vector<8x8xf32>
    %89 = math.sin %88 : vector<8x8xf32>
    %90 = arith.mulf %4, %89 : vector<8x8xf32>
    %cst_28 = arith.constant 2.000000e+00 : f32
    %91 = vector.broadcast %cst_28 : f32 to vector<8x8xf32>
    %92 = arith.mulf %91, %88 : vector<8x8xf32>
    %93 = math.sin %92 : vector<8x8xf32>
    %94 = arith.mulf %5, %93 : vector<8x8xf32>
    %95 = arith.addf %90, %94 : vector<8x8xf32>
    %cst_29 = arith.constant dense<0.000000e+00> : vector<8xf32>
    %96 = vector.multi_reduction <add>, %95, %cst_29 [0] : vector<8x8xf32> to vector<8xf32>
    %97 = vector.shape_cast %96 : vector<8xf32> to vector<1x8xf32>
    %cst_30 = arith.constant 0.000000e+00 : f32
    %98 = vector.broadcast %cst_30 : f32 to vector<1x8xf32>
    %99 = arith.subf %98, %97 : vector<1x8xf32>
    %cst_31 = arith.constant dense<0.000000e+00> : vector<8xf32>
    %100 = vector.multi_reduction <add>, %95, %cst_31 [1] : vector<8x8xf32> to vector<8xf32>
    %101 = vector.shape_cast %100 : vector<8xf32> to vector<8x1xf32>
    %102 = arith.subf %51, %99 : vector<1x8xf32>
    %cst_32 = arith.constant 2.000000e-02 : f32
    %103 = vector.broadcast %cst_32 : f32 to vector<1x8xf32>
    %104 = arith.mulf %103, %102 : vector<1x8xf32>
    %105 = arith.subf %57, %101 : vector<8x1xf32>
    %cst_33 = arith.constant 2.000000e-02 : f32
    %106 = vector.broadcast %cst_33 : f32 to vector<8x1xf32>
    %107 = arith.mulf %106, %105 : vector<8x1xf32>
    %cst_34 = arith.constant 5.000000e-01 : f32
    %108 = vector.broadcast %cst_34 : f32 to vector<1x8xf32>
    %109 = arith.mulf %108, %104 : vector<1x8xf32>
    %110 = arith.addf %0, %109 : vector<1x8xf32>
    %cst_35 = arith.constant 5.000000e-01 : f32
    %111 = vector.broadcast %cst_35 : f32 to vector<8x1xf32>
    %112 = arith.mulf %111, %107 : vector<8x1xf32>
    %113 = arith.addf %8, %112 : vector<8x1xf32>
    %114 = vector.broadcast %113 : vector<8x1xf32> to vector<8x8xf32>
    %115 = vector.broadcast %110 : vector<1x8xf32> to vector<8x8xf32>
    %116 = arith.subf %114, %115 : vector<8x8xf32>
    %117 = math.sin %116 : vector<8x8xf32>
    %118 = arith.mulf %4, %117 : vector<8x8xf32>
    %cst_36 = arith.constant 2.000000e+00 : f32
    %119 = vector.broadcast %cst_36 : f32 to vector<8x8xf32>
    %120 = arith.mulf %119, %116 : vector<8x8xf32>
    %121 = math.sin %120 : vector<8x8xf32>
    %122 = arith.mulf %5, %121 : vector<8x8xf32>
    %123 = arith.addf %118, %122 : vector<8x8xf32>
    %cst_37 = arith.constant dense<0.000000e+00> : vector<8xf32>
    %124 = vector.multi_reduction <add>, %123, %cst_37 [0] : vector<8x8xf32> to vector<8xf32>
    %125 = vector.shape_cast %124 : vector<8xf32> to vector<1x8xf32>
    %cst_38 = arith.constant 0.000000e+00 : f32
    %126 = vector.broadcast %cst_38 : f32 to vector<1x8xf32>
    %127 = arith.subf %126, %125 : vector<1x8xf32>
    %cst_39 = arith.constant dense<0.000000e+00> : vector<8xf32>
    %128 = vector.multi_reduction <add>, %123, %cst_39 [1] : vector<8x8xf32> to vector<8xf32>
    %129 = vector.shape_cast %128 : vector<8xf32> to vector<8x1xf32>
    %130 = arith.subf %51, %127 : vector<1x8xf32>
    %cst_40 = arith.constant 2.000000e-02 : f32
    %131 = vector.broadcast %cst_40 : f32 to vector<1x8xf32>
    %132 = arith.mulf %131, %130 : vector<1x8xf32>
    %133 = arith.subf %57, %129 : vector<8x1xf32>
    %cst_41 = arith.constant 2.000000e-02 : f32
    %134 = vector.broadcast %cst_41 : f32 to vector<8x1xf32>
    %135 = arith.mulf %134, %133 : vector<8x1xf32>
    %136 = arith.addf %0, %132 : vector<1x8xf32>
    %137 = arith.addf %8, %135 : vector<8x1xf32>
    %138 = vector.broadcast %137 : vector<8x1xf32> to vector<8x8xf32>
    %139 = vector.broadcast %136 : vector<1x8xf32> to vector<8x8xf32>
    %140 = arith.subf %138, %139 : vector<8x8xf32>
    %141 = math.sin %140 : vector<8x8xf32>
    %142 = arith.mulf %4, %141 : vector<8x8xf32>
    %cst_42 = arith.constant 2.000000e+00 : f32
    %143 = vector.broadcast %cst_42 : f32 to vector<8x8xf32>
    %144 = arith.mulf %143, %140 : vector<8x8xf32>
    %145 = math.sin %144 : vector<8x8xf32>
    %146 = arith.mulf %5, %145 : vector<8x8xf32>
    %147 = arith.addf %142, %146 : vector<8x8xf32>
    %cst_43 = arith.constant dense<0.000000e+00> : vector<8xf32>
    %148 = vector.multi_reduction <add>, %147, %cst_43 [0] : vector<8x8xf32> to vector<8xf32>
    %149 = vector.shape_cast %148 : vector<8xf32> to vector<1x8xf32>
    %cst_44 = arith.constant 0.000000e+00 : f32
    %150 = vector.broadcast %cst_44 : f32 to vector<1x8xf32>
    %151 = arith.subf %150, %149 : vector<1x8xf32>
    %152 = arith.subf %51, %151 : vector<1x8xf32>
    %cst_45 = arith.constant 2.000000e-02 : f32
    %153 = vector.broadcast %cst_45 : f32 to vector<1x8xf32>
    %154 = arith.mulf %153, %152 : vector<1x8xf32>
    %cst_46 = arith.constant 2.000000e+00 : f32
    %155 = vector.broadcast %cst_46 : f32 to vector<1x8xf32>
    %156 = arith.mulf %155, %104 : vector<1x8xf32>
    %157 = arith.addf %76, %156 : vector<1x8xf32>
    %cst_47 = arith.constant 2.000000e+00 : f32
    %158 = vector.broadcast %cst_47 : f32 to vector<1x8xf32>
    %159 = arith.mulf %158, %132 : vector<1x8xf32>
    %160 = arith.addf %157, %159 : vector<1x8xf32>
    %161 = arith.addf %160, %154 : vector<1x8xf32>
    %cst_48 = arith.constant 0.166666672 : f32
    %162 = vector.broadcast %cst_48 : f32 to vector<1x8xf32>
    %163 = arith.mulf %162, %161 : vector<1x8xf32>
    %164 = arith.addf %0, %163 : vector<1x8xf32>
    %c0_49 = arith.constant 0 : index
    %c0_50 = arith.constant 0 : index
    %165 = vector.load %arg2[%c0_49, %c0_50] : memref<1x8xf32, #tpu.memory_space<vmem>>, vector<1x8xf32>
    tpu.vector_store %arg2[%c0_49, %c0_50], %164 {strides = array<i32>} : memref<1x8xf32, #tpu.memory_space<vmem>>, vector<1x8xf32>,
    %c2_i32 = arith.constant 2 : i32
    %166 = vector.broadcast %c2_i32 : i32 to vector<1x8xi32>
    %167 = arith.cmpi eq, %11, %166 : vector<1x8xi32>
    %cst_51 = arith.constant 1.000000e+00 : f32
    %cst_52 = arith.constant 0.000000e+00 : f32
    %168 = vector.broadcast %cst_51 : f32 to vector<1x8xf32>
    %169 = vector.broadcast %cst_52 : f32 to vector<1x8xf32>
    %170 = arith.select %167, %168, %169 : vector<1x8xi1>, vector<1x8xf32>
    %c3_i32 = arith.constant 3 : i32
    %171 = vector.broadcast %c3_i32 : i32 to vector<1x8xi32>
    %172 = arith.cmpi eq, %11, %171 : vector<1x8xi32>
    %cst_53 = arith.constant 1.000000e+00 : f32
    %cst_54 = arith.constant 0.000000e+00 : f32
    %173 = vector.broadcast %cst_53 : f32 to vector<1x8xf32>
    %174 = vector.broadcast %cst_54 : f32 to vector<1x8xf32>
    %175 = arith.select %172, %173, %174 : vector<1x8xi1>, vector<1x8xf32>
    %176 = arith.subf %170, %175 : vector<1x8xf32>
    %177 = arith.mulf %164, %176 : vector<1x8xf32>
    %178 = vector.shape_cast %177 : vector<1x8xf32> to vector<1x1x8xf32>
    %cst_55 = arith.constant dense<0.000000e+00> : vector<1xf32>
    %179 = vector.multi_reduction <add>, %178, %cst_55 [1, 2] : vector<1x1x8xf32> to vector<1xf32>
    %180 = vector.shape_cast %179 : vector<1xf32> to vector<1x1x1xf32>
    %181 = vector.extract %180[0, 0, 0] : f32 from vector<1x1x1xf32>
    %182 = tpu.iota {dimensions = array<i32: 1>} : vector<1x384xi32>
    %183 = arith.sitofp %182 : vector<1x384xi32> to vector<1x384xf32>
    %cst_56 = arith.constant 0.0175019093 : f32
    %184 = vector.broadcast %cst_56 : f32 to vector<1x384xf32>
    %185 = arith.mulf %183, %184 : vector<1x384xf32>
    %186 = vector.broadcast %181 : f32 to vector<1x384xf32>
    %187 = arith.subf %186, %185 : vector<1x384xf32>
    %188 = math.cos %187 : vector<1x384xf32>
    %cst_57 = arith.constant 1.000000e+00 : f32
    %189 = vector.broadcast %cst_57 : f32 to vector<1x384xf32>
    %190 = arith.subf %189, %188 : vector<1x384xf32>
    %cst_58 = arith.constant 0.159154937 : f32
    %191 = vector.broadcast %cst_58 : f32 to vector<1x384xf32>
    %192 = arith.mulf %191, %190 : vector<1x384xf32>
    %c360_i32 = arith.constant 360 : i32
    %193 = vector.broadcast %c360_i32 : i32 to vector<1x384xi32>
    %194 = arith.cmpi slt, %182, %193 : vector<1x384xi32>
    %195 = math.exp %192 : vector<1x384xf32>
    %cst_59 = arith.constant 0.000000e+00 : f32
    %196 = vector.broadcast %cst_59 : f32 to vector<1x384xf32>
    %197 = arith.select %194, %195, %196 : vector<1x384xi1>, vector<1x384xf32>
    %cst_60 = arith.constant dense<0.000000e+00> : vector<1xf32>
    %198 = vector.multi_reduction <add>, %197, %cst_60 [1] : vector<1x384xf32> to vector<1xf32>
    %199 = vector.shape_cast %198 : vector<1xf32> to vector<1x1xf32>
    %200 = tpu.reciprocal %199 {approx = true} : vector<1x1xf32> -> vector<1x1xf32>
    %201 = arith.mulf %199, %200 : vector<1x1xf32>
    %cst_61 = arith.constant 2.000000e+00 : f32
    %202 = vector.broadcast %cst_61 : f32 to vector<1x1xf32>
    %203 = arith.subf %202, %201 : vector<1x1xf32>
    %204 = arith.mulf %200, %203 : vector<1x1xf32>
    %205 = vector.broadcast %204 : vector<1x1xf32> to vector<1x384xf32>
    %206 = arith.mulf %197, %205 : vector<1x384xf32>
    %c0_62 = arith.constant 0 : index
    %c0_63 = arith.constant 0 : index
    %207 = vector.load %arg1[%c0_62, %c0_63] : memref<1x384xf32, #tpu.memory_space<vmem>>, vector<1x384xf32>
    tpu.vector_store %arg1[%c0_62, %c0_63], %206 {strides = array<i32>} : memref<1x384xf32, #tpu.memory_space<vmem>>, vector<1x384xf32>,
    return
  }
}

</mosaic_0001>

<llo_original>
// kernel: step.1
$region0: #{step.1}
  #allocation0 [shape = 'u32[]', space=smem, size = 0x4, offset = 0x4, fixed_abs, tag = 'smem constant byte address 0x4 - core index']
  #allocation1 [shape = 'u32[144,128]{1,0:T(1,128)}', space=vmem, size = 0x12000, scoped, tag = 'internal scratch']
  %s0 = inlined_call_operand.vmem [shape: f32[48,8], index: 0, kind: input, shape index: {}]
  %s1 = inlined_call_operand.hbm [shape: f32[1,384], index: 1, kind: output, shape index: {0}]
  %s2 = inlined_call_operand.vmem [shape: f32[1,8], index: 2, kind: output, shape index: {1}]
  %3 = xla_tuple %s1, %s2
  %s4 = sld [smem:[#allocation0]]
  $region22: #{step.1} parent=0
    _
  %s6 = ssub.s32 1, %s4
  %s7 = scalar_select 0, %s6, %s4
  $region1: #{step.1} parent=0
    #allocation2 [shape = 'u8[1536]{0}', space=vmem, size = 0x800, scoped, tag = 'output window, operand 0, single buffered']
    #allocation3 [shape = 's32[1]{0}', space=sflag, size = 0x4, scoped, tag = 'scoped memory for step.1']
    %8 = vsyncpa [#allocation3], 0
    // Predicated region
    $region2: #{step.1} parent=1 // pred_check
      _
    $region3: #{step.1} parent=1 // pred_check_branch
      %10 = sbr.rel (0) target = $region5
    $region4: #{step.1} parent=1 // pred_region
      _
    $region5: #{step.1} parent=1 // pred_fallthru
      _
    %v11 = vld [vmem:[%s0] sm:$0x1]
    %v12 = vld [vmem:[%s0 + $0x1] sm:$0x1]
    %v13 = vld [vmem:[%s0 + $0x2] sm:$0x1]
    %v14 = vld [vmem:[%s0 + $0x3] sm:$0x1]
    %v15 = vld [vmem:[%s0 + $0x8] sm:$0xff]
    %v16 = vld [vmem:[%s0 + $0x10] sm:$0xff]
    %v17 = vld [vmem:[%s0 + $0x19] sm:$0x1]
    %v18 = vld [vmem:[%s0 + $0x20] sm:$0xff]
    %v19 = vld [vmem:[%s0 + $0x28] sm:$0xff]
    %v20 = vlaneseq
    %v21 = vand.u32 %v20, 127
    %v22 = vlaneseq
    %v23 = vshrl.u32 %v22, 7
    %vm24 = vcmp.eq.s32.totalorder %v21, 1
    %v25 = vsel %vm24, 1.0, 0.0
    %v26 = vmul.f32 %v13, %v25
    %vm27 = vcmask 57344
    %v28 = vsel %vm27, %v26, 0.0
    %29 = vadd.xlane.f32.xlu0 %v28
    %v30 = vpop.xlane.xlu0 %29
    %v31 = vrot.slane %v30, 4
    %v32 = vadd.f32 %v30, %v31
    %v33 = vrot.slane %v32, 2
    %v34 = vadd.f32 %v32, %v33
    %v35 = vrot.slane %v34, 1
    %v36 = vadd.f32 %v34, %v35
    %s37 = vtos %v36
    %v38 = vmul.f32 %v17, -0.1
    %v39 = vmul.f32 %v38, 1.442695
    %v40 = vpow.pop %v39
    %v41 = vmul.f32 %v40, %v14
    %v42 = vstv %s37
    %v43 = vsub.f32 %v42, %v13
    %v44 = vand.u32 2147483647, %v43
    %vm45 = vcmp.le.f32.partialorder %v44, 0.7853982
    %vm46 = vcmp.lt.s32.totalorder %v43, 0
    %v47 = vand.u32 %v43, 2139095040
    %v48 = vshrl.u32 %v47, 23
    %v49 = vsub.s32 %v48, 127
    %v50 = vand.u32 2147483647, %v43
    %v51 = vand.u32 %v50, 8388607
    %v52 = vor.u32 %v51, 8388608
    %v53 = vsub.s32 0, %v52
    %v54 = vadd.s32 %v49, 1
    %vm55 = vcmp.gt.s32.totalorder %v54, 0
    %v56 = vsel %vm55, %v54, 0
    %v57 = vshrl.u32 %v56, 5
    %v58 = vand.u32 %v56, 31
    %v59 = vsub.s32 32, %v58
    %v60 = vshrl.u32 683565275, %v59
    %v61 = vshll.u32 683565275, %v58
    %v62 = vshrl.u32 2475754826, %v59
    %v63 = vor.u32 %v61, %v62
    %v64 = vshll.u32 2475754826, %v58
    %v65 = vshrl.u32 2131351028, %v59
    %v66 = vor.u32 %v64, %v65
    %v67 = vshll.u32 2131351028, %v58
    %v68 = vshrl.u32 2102212464, %v59
    %v69 = vor.u32 %v67, %v68
    %v70 = vshll.u32 2102212464, %v58
    %v71 = vshrl.u32 920167782, %v59
    %v72 = vor.u32 %v70, %v71
    %v73 = vshll.u32 920167782, %v58
    %v74 = vshrl.u32 1326507024, %v59
    %v75 = vor.u32 %v73, %v74
    %vm76 = vcmp.lt.s32.totalorder %v57, 1
    %vm77 = vcmp.lt.s32.totalorder %v57, 2
    %vm78 = vcmp.lt.s32.totalorder %v57, 3
    %vm79 = vcmp.lt.s32.totalorder %v57, 4
    %v80 = vsel %vm76, %v60, %v63
    %v81 = vsel %vm79, %v69, 2102212464
    %v82 = vsel %vm78, %v66, %v81
    %v83 = vsel %vm77, %v80, %v82
    %v84 = vsel %vm76, %v63, %v66
    %v85 = vsel %vm79, %v72, 920167782
    %v86 = vsel %vm78, %v69, %v85
    %v87 = vsel %vm77, %v84, %v86
    %v88 = vsel %vm76, %v66, %v69
    %v89 = vsel %vm79, %v75, 1326507024
    %v90 = vsel %vm78, %v72, %v89
    %v91 = vsel %vm77, %v88, %v90
    %v92 = vshll.u32 %v52, 8
    %v93 = vmul.u32.u64.compose %v92, %v91
    %v94 = vextract.low.u32 %v93
    %v95 = vextract.high.u32 %v93
    %v96 = vmul.u32.u64.compose %v92, %v87
    %v97 = vextract.low.u32 %v96
    %v98 = vextract.high.u32 %v96
    %v99 = vmul.u32 %v92, %v83
    %v100 = vadd.s32 %v95, %v97
    %vm101 = vc.u32 %v95, %v97
    %v102 = vadd.s32 %v98, 1
    %v103 = vsel %vm101, %v102, %v98
    %v104 = vadd.s32 %v99, %v103
    %v105 = vadd.s32 %v104, 536870912
    %v106 = vshrl.u32 %v105, 30
    %v107 = vshll.u32 %v106, 30
    %v108 = vsub.s32 %v104, %v107
    %vm109 = vcmp.lt.s32.totalorder %v108, 0
    %v110 = vsub.s32 0, %v108
    %v111 = vsel %vm109, %v110, %v108
    %v112 = vclz %v111
    %v113 = vsub.s32 %v112, 2
    %vm114 = vcmp.gt.s32.totalorder 0, %v113
    %v115 = vsel %vm114, 0, %v113
    %v116 = vsub.s32 32, %v115
    %v117 = vshll.u32 %v108, %v115
    %v118 = vshrl.u32 %v100, %v116
    %v119 = vor.u32 %v117, %v118
    %v120 = vsub.s32 4294967266, %v115
    %v121 = vadd.s32 %v120, 127
    %v122 = vshll.u32 %v121, 23
    %v123 = vor.u32 4788187, %v122
    %v124 = vand.u32 2147483647, %v123
    %v126 = vcvt.s32.f32 %v119
    %v127 = vmul.f32 %v126, %v124
    %v128 = vxor.u32 %v127, 2147483648
    %v129 = vsel %vm46, %v128, %v127
    %v130 = vsub.s32 4, %v106
    %v131 = vsel %vm46, %v130, %v106
    %v132 = vsel %vm45, %v43, %v129
    %v133 = vsel %vm45, 0, %v131
    %v134 = vcosq.f32.pop %v132
    %v135 = vsinq.f32.pop %v132
    %vm136 = vweird.f32 %v43
    %v137 = vadd.s32 %v133, 3
    %v138 = vand.u32 %v137, 3
    %vm139 = vcmp.lt.s32.totalorder %v138, 2
    %vm140 = vcmp.eq.s32.totalorder %v138, 0
    %v141 = vxor.u32 %v135, 2147483648
    %v142 = vsel %vm140, %v134, %v141
    %vm143 = vcmp.eq.s32.totalorder %v138, 2
    %v144 = vxor.u32 %v134, 2147483648
    %v145 = vsel %vm143, %v144, %v135
    %v146 = vsel %vm139, %v142, %v145
    %v147 = vsel %vm136, nan, %v146
    %v148 = vmul.f32 %v41, %v147
    %v149 = vsel %vm27, %v148, 0.0
    %150 = vadd.xlane.f32.xlu0 %v149
    %v151 = vpop.xlane.xlu0 %150
    %v152 = vrot.slane %v151, 4
    %v153 = vadd.f32 %v151, %v152
    %v154 = vrot.slane %v153, 2
    %v155 = vadd.f32 %v153, %v154
    %v156 = vrot.slane %v155, 1
    %v157 = vadd.f32 %v155, %v156
    %s158 = vtos %v157
    %s159 = smul.f32 %s158, 0.8
    %v160 = vmul.f32 %v43, 2.0
    %v161 = vand.u32 2147483647, %v160
    %vm162 = vcmp.le.f32.partialorder %v161, 0.7853982
    %vm163 = vcmp.lt.s32.totalorder %v160, 0
    %v164 = vand.u32 %v160, 2139095040
    %v165 = vshrl.u32 %v164, 23
    %v166 = vsub.s32 %v165, 127
    %v167 = vand.u32 2147483647, %v160
    %v168 = vand.u32 %v167, 8388607
    %v169 = vor.u32 %v168, 8388608
    %v170 = vsub.s32 0, %v169
    %v171 = vadd.s32 %v166, 1
    %vm172 = vcmp.gt.s32.totalorder %v171, 0
    %v173 = vsel %vm172, %v171, 0
    %v174 = vshrl.u32 %v173, 5
    %v175 = vand.u32 %v173, 31
    %v176 = vsub.s32 32, %v175
    %v177 = vshrl.u32 683565275, %v176
    %v178 = vshll.u32 683565275, %v175
    %v179 = vshrl.u32 2475754826, %v176
    %v180 = vor.u32 %v178, %v179
    %v181 = vshll.u32 2475754826, %v175
    %v182 = vshrl.u32 2131351028, %v176
    %v183 = vor.u32 %v181, %v182
    %v184 = vshll.u32 2131351028, %v175
    %v185 = vshrl.u32 2102212464, %v176
    %v186 = vor.u32 %v184, %v185
    %v187 = vshll.u32 2102212464, %v175
    %v188 = vshrl.u32 920167782, %v176
    %v189 = vor.u32 %v187, %v188
    %v190 = vshll.u32 920167782, %v175
    %v191 = vshrl.u32 1326507024, %v176
    %v192 = vor.u32 %v190, %v191
    %vm193 = vcmp.lt.s32.totalorder %v174, 1
    %vm194 = vcmp.lt.s32.totalorder %v174, 2
    %vm195 = vcmp.lt.s32.totalorder %v174, 3
    %vm196 = vcmp.lt.s32.totalorder %v174, 4
    %v197 = vsel %vm193, %v177, %v180
    %v198 = vsel %vm196, %v186, 2102212464
    %v199 = vsel %vm195, %v183, %v198
    %v200 = vsel %vm194, %v197, %v199
    %v201 = vsel %vm193, %v180, %v183
    %v202 = vsel %vm196, %v189, 920167782
    %v203 = vsel %vm195, %v186, %v202
    %v204 = vsel %vm194, %v201, %v203
    %v205 = vsel %vm193, %v183, %v186
    %v206 = vsel %vm196, %v192, 1326507024
    %v207 = vsel %vm195, %v189, %v206
    %v208 = vsel %vm194, %v205, %v207
    %v209 = vshll.u32 %v169, 8
    %v210 = vmul.u32.u64.compose %v209, %v208
    %v211 = vextract.low.u32 %v210
    %v212 = vextract.high.u32 %v210
    %v213 = vmul.u32.u64.compose %v209, %v204
    %v214 = vextract.low.u32 %v213
    %v215 = vextract.high.u32 %v213
    %v216 = vmul.u32 %v209, %v200
    %v217 = vadd.s32 %v212, %v214
    %vm218 = vc.u32 %v212, %v214
    %v219 = vadd.s32 %v215, 1
    %v220 = vsel %vm218, %v219, %v215
    %v221 = vadd.s32 %v216, %v220
    %v222 = vadd.s32 %v221, 536870912
    %v223 = vshrl.u32 %v222, 30
    %v224 = vshll.u32 %v223, 30
    %v225 = vsub.s32 %v221, %v224
    %vm226 = vcmp.lt.s32.totalorder %v225, 0
    %v227 = vsub.s32 0, %v225
    %v228 = vsel %vm226, %v227, %v225
    %v229 = vclz %v228
    %v230 = vsub.s32 %v229, 2
    %vm231 = vcmp.gt.s32.totalorder 0, %v230
    %v232 = vsel %vm231, 0, %v230
    %v233 = vsub.s32 32, %v232
    %v234 = vshll.u32 %v225, %v232
    %v235 = vshrl.u32 %v217, %v233
    %v236 = vor.u32 %v234, %v235
    %v237 = vsub.s32 4294967266, %v232
    %v238 = vadd.s32 %v237, 127
    %v239 = vshll.u32 %v238, 23
    %v240 = vor.u32 4788187, %v239
    %v241 = vand.u32 2147483647, %v240
    %v243 = vcvt.s32.f32 %v236
    %v244 = vmul.f32 %v243, %v241
    %v245 = vxor.u32 %v244, 2147483648
    %v246 = vsel %vm163, %v245, %v244
    %v247 = vsub.s32 4, %v223
    %v248 = vsel %vm163, %v247, %v223
    %v249 = vsel %vm162, %v160, %v246
    %v250 = vsel %vm162, 0, %v248
    %v251 = vcosq.f32.pop %v249
    %v252 = vsinq.f32.pop %v249
    %vm253 = vweird.f32 %v160
    %v254 = vadd.s32 %v250, 3
    %v255 = vand.u32 %v254, 3
    %vm256 = vcmp.lt.s32.totalorder %v255, 2
    %vm257 = vcmp.eq.s32.totalorder %v255, 0
    %v258 = vxor.u32 %v252, 2147483648
    %v259 = vsel %vm257, %v251, %v258
    %vm260 = vcmp.eq.s32.totalorder %v255, 2
    %v261 = vxor.u32 %v251, 2147483648
    %v262 = vsel %vm260, %v261, %v252
    %v263 = vsel %vm256, %v259, %v262
    %v264 = vsel %vm253, nan, %v263
    %v265 = vmul.f32 %v41, %v264
    %v266 = vsel %vm27, %v265, 0.0
    %267 = vadd.xlane.f32.xlu0 %v266
    %v268 = vpop.xlane.xlu0 %267
    %v269 = vrot.slane %v268, 4
    %v270 = vadd.f32 %v268, %v269
    %v271 = vrot.slane %v270, 2
    %v272 = vadd.f32 %v270, %v271
    %v273 = vrot.slane %v272, 1
    %v274 = vadd.f32 %v272, %v273
    %s275 = vtos %v274
    %s276 = smul.f32 %s275, 0.4
    %s277 = sadd.f32 %s159, %s276
    %vm278 = vcmp.eq.s32.totalorder %v21, 4
    %v279 = vstv %s277
    %v280 = vsel %vm278, %v279, 0.0
    %v281 = vsub.f32 %v12, %v280
    %vm282 = vcmp.eq.s32.totalorder %v23, 4
    %v283 = vsel %vm282, %v279, 0.0
    %v284 = vsub.f32 %v19, %v283
    %286 = vset.pattern.permute.xlu0 0
    %287 = vperm.xlu0 %286, %v18
    %v288 = vpop.permute.xlu0 %287
    %v290 = vlaneseq
    %v291 = vshrl.u32 %v290, 7
    %v292 = vsub.s32 0, %v291
    %v293 = vrot.slane %v11, %v292
    %v294 = vsub.f32 %v288, %v293
    %v295 = vand.u32 2147483647, %v294
    %vm296 = vcmp.le.f32.partialorder %v295, 0.7853982
    %vm297 = vcmp.lt.s32.totalorder %v294, 0
    %v298 = vand.u32 %v294, 2139095040
    %v299 = vshrl.u32 %v298, 23
    %v300 = vsub.s32 %v299, 127
    %v301 = vand.u32 2147483647, %v294
    %v302 = vand.u32 %v301, 8388607
    %v303 = vor.u32 %v302, 8388608
    %v304 = vsub.s32 0, %v303
    %v305 = vadd.s32 %v300, 1
    %vm306 = vcmp.gt.s32.totalorder %v305, 0
    %v307 = vsel %vm306, %v305, 0
    %v308 = vshrl.u32 %v307, 5
    %v309 = vand.u32 %v307, 31
    %v310 = vsub.s32 32, %v309
    %v311 = vshrl.u32 683565275, %v310
    %v312 = vshll.u32 683565275, %v309
    %v313 = vshrl.u32 2475754826, %v310
    %v314 = vor.u32 %v312, %v313
    %v315 = vshll.u32 2475754826, %v309
    %v316 = vshrl.u32 2131351028, %v310
    %v317 = vor.u32 %v315, %v316
    %v318 = vshll.u32 2131351028, %v309
    %v319 = vshrl.u32 2102212464, %v310
    %v320 = vor.u32 %v318, %v319
    %v321 = vshll.u32 2102212464, %v309
    %v322 = vshrl.u32 920167782, %v310
    %v323 = vor.u32 %v321, %v322
    %v324 = vshll.u32 920167782, %v309
    %v325 = vshrl.u32 1326507024, %v310
    %v326 = vor.u32 %v324, %v325
    %vm327 = vcmp.lt.s32.totalorder %v308, 1
    %vm328 = vcmp.lt.s32.totalorder %v308, 2
    %vm329 = vcmp.lt.s32.totalorder %v308, 3
    %vm330 = vcmp.lt.s32.totalorder %v308, 4
    %v331 = vsel %vm327, %v311, %v314
    %v332 = vsel %vm330, %v320, 2102212464
    %v333 = vsel %vm329, %v317, %v332
    %v334 = vsel %vm328, %v331, %v333
    %v335 = vsel %vm327, %v314, %v317
    %v336 = vsel %vm330, %v323, 920167782
    %v337 = vsel %vm329, %v320, %v336
    %v338 = vsel %vm328, %v335, %v337
    %v339 = vsel %vm327, %v317, %v320
    %v340 = vsel %vm330, %v326, 1326507024
    %v341 = vsel %vm329, %v323, %v340
    %v342 = vsel %vm328, %v339, %v341
    %v343 = vshll.u32 %v303, 8
    %v344 = vmul.u32.u64.compose %v343, %v342
    %v345 = vextract.low.u32 %v344
    %v346 = vextract.high.u32 %v344
    %v347 = vmul.u32.u64.compose %v343, %v338
    %v348 = vextract.low.u32 %v347
    %v349 = vextract.high.u32 %v347
    %v350 = vmul.u32 %v343, %v334
    %v351 = vadd.s32 %v346, %v348
    %vm352 = vc.u32 %v346, %v348
    %v353 = vadd.s32 %v349, 1
    %v354 = vsel %vm352, %v353, %v349
    %v355 = vadd.s32 %v350, %v354
    %v356 = vadd.s32 %v355, 536870912
    %v357 = vshrl.u32 %v356, 30
    %v358 = vshll.u32 %v357, 30
    %v359 = vsub.s32 %v355, %v358
    %vm360 = vcmp.lt.s32.totalorder %v359, 0
    %v361 = vsub.s32 0, %v359
    %v362 = vsel %vm360, %v361, %v359
    %v363 = vclz %v362
    %v364 = vsub.s32 %v363, 2
    %vm365 = vcmp.gt.s32.totalorder 0, %v364
    %v366 = vsel %vm365, 0, %v364
    %v367 = vsub.s32 32, %v366
    %v368 = vshll.u32 %v359, %v366
    %v369 = vshrl.u32 %v351, %v367
    %v370 = vor.u32 %v368, %v369
    %v371 = vsub.s32 4294967266, %v366
    %v372 = vadd.s32 %v371, 127
    %v373 = vshll.u32 %v372, 23
    %v374 = vor.u32 4788187, %v373
    %v375 = vand.u32 2147483647, %v374
    %v377 = vcvt.s32.f32 %v370
    %v378 = vmul.f32 %v377, %v375
    %v379 = vxor.u32 %v378, 2147483648
    %v380 = vsel %vm297, %v379, %v378
    %v381 = vsub.s32 4, %v357
    %v382 = vsel %vm297, %v381, %v357
    %v383 = vsel %vm296, %v294, %v380
    %v384 = vsel %vm296, 0, %v382
    %v385 = vcosq.f32.pop %v383
    %v386 = vsinq.f32.pop %v383
    %vm387 = vweird.f32 %v294
    %v388 = vadd.s32 %v384, 3
    %v389 = vand.u32 %v388, 3
    %vm390 = vcmp.lt.s32.totalorder %v389, 2
    %vm391 = vcmp.eq.s32.totalorder %v389, 0
    %v392 = vxor.u32 %v386, 2147483648
    %v393 = vsel %vm391, %v385, %v392
    %vm394 = vcmp.eq.s32.totalorder %v389, 2
    %v395 = vxor.u32 %v385, 2147483648
    %v396 = vsel %vm394, %v395, %v386
    %v397 = vsel %vm390, %v393, %v396
    %v398 = vsel %vm387, nan, %v397
    %v399 = vmul.f32 %v15, %v398
    %v400 = vmul.f32 %v294, 2.0
    %v401 = vand.u32 2147483647, %v400
    %vm402 = vcmp.le.f32.partialorder %v401, 0.7853982
    %vm403 = vcmp.lt.s32.totalorder %v400, 0
    %v404 = vand.u32 %v400, 2139095040
    %v405 = vshrl.u32 %v404, 23
    %v406 = vsub.s32 %v405, 127
    %v407 = vand.u32 2147483647, %v400
    %v408 = vand.u32 %v407, 8388607
    %v409 = vor.u32 %v408, 8388608
    %v410 = vsub.s32 0, %v409
    %v411 = vadd.s32 %v406, 1
    %vm412 = vcmp.gt.s32.totalorder %v411, 0
    %v413 = vsel %vm412, %v411, 0
    %v414 = vshrl.u32 %v413, 5
    %v415 = vand.u32 %v413, 31
    %v416 = vsub.s32 32, %v415
    %v417 = vshrl.u32 683565275, %v416
    %v418 = vshll.u32 683565275, %v415
    %v419 = vshrl.u32 2475754826, %v416
    %v420 = vor.u32 %v418, %v419
    %v421 = vshll.u32 2475754826, %v415
    %v422 = vshrl.u32 2131351028, %v416
    %v423 = vor.u32 %v421, %v422
    %v424 = vshll.u32 2131351028, %v415
    %v425 = vshrl.u32 2102212464, %v416
    %v426 = vor.u32 %v424, %v425
    %v427 = vshll.u32 2102212464, %v415
    %v428 = vshrl.u32 920167782, %v416
    %v429 = vor.u32 %v427, %v428
    %v430 = vshll.u32 920167782, %v415
    %v431 = vshrl.u32 1326507024, %v416
    %v432 = vor.u32 %v430, %v431
    %vm433 = vcmp.lt.s32.totalorder %v414, 1
    %vm434 = vcmp.lt.s32.totalorder %v414, 2
    %vm435 = vcmp.lt.s32.totalorder %v414, 3
    %vm436 = vcmp.lt.s32.totalorder %v414, 4
    %v437 = vsel %vm433, %v417, %v420
    %v438 = vsel %vm436, %v426, 2102212464
    %v439 = vsel %vm435, %v423, %v438
    %v440 = vsel %vm434, %v437, %v439
    %v441 = vsel %vm433, %v420, %v423
    %v442 = vsel %vm436, %v429, 920167782
    %v443 = vsel %vm435, %v426, %v442
    %v444 = vsel %vm434, %v441, %v443
    %v445 = vsel %vm433, %v423, %v426
    %v446 = vsel %vm436, %v432, 1326507024
    %v447 = vsel %vm435, %v429, %v446
    %v448 = vsel %vm434, %v445, %v447
    %v449 = vshll.u32 %v409, 8
    %v450 = vmul.u32.u64.compose %v449, %v448
    %v451 = vextract.low.u32 %v450
    %v452 = vextract.high.u32 %v450
    %v453 = vmul.u32.u64.compose %v449, %v444
    %v454 = vextract.low.u32 %v453
    %v455 = vextract.high.u32 %v453
    %v456 = vmul.u32 %v449, %v440
    %v457 = vadd.s32 %v452, %v454
    %vm458 = vc.u32 %v452, %v454
    %v459 = vadd.s32 %v455, 1
    %v460 = vsel %vm458, %v459, %v455
    %v461 = vadd.s32 %v456, %v460
    %v462 = vadd.s32 %v461, 536870912
    %v463 = vshrl.u32 %v462, 30
    %v464 = vshll.u32 %v463, 30
    %v465 = vsub.s32 %v461, %v464
    %vm466 = vcmp.lt.s32.totalorder %v465, 0
    %v467 = vsub.s32 0, %v465
    %v468 = vsel %vm466, %v467, %v465
    %v469 = vclz %v468
    %v470 = vsub.s32 %v469, 2
    %vm471 = vcmp.gt.s32.totalorder 0, %v470
    %v472 = vsel %vm471, 0, %v470
    %v473 = vsub.s32 32, %v472
    %v474 = vshll.u32 %v465, %v472
    %v475 = vshrl.u32 %v457, %v473
    %v476 = vor.u32 %v474, %v475
    %v477 = vsub.s32 4294967266, %v472
    %v478 = vadd.s32 %v477, 127
    %v479 = vshll.u32 %v478, 23
    %v480 = vor.u32 4788187, %v479
    %v481 = vand.u32 2147483647, %v480
    %v483 = vcvt.s32.f32 %v476
    %v484 = vmul.f32 %v483, %v481
    %v485 = vxor.u32 %v484, 2147483648
    %v486 = vsel %vm403, %v485, %v484
    %v487 = vsub.s32 4, %v463
    %v488 = vsel %vm403, %v487, %v463
    %v489 = vsel %vm402, %v400, %v486
    %v490 = vsel %vm402, 0, %v488
    %v491 = vcosq.f32.pop %v489
    %v492 = vsinq.f32.pop %v489
    %vm493 = vweird.f32 %v400
    %v494 = vadd.s32 %v490, 3
    %v495 = vand.u32 %v494, 3
    %vm496 = vcmp.lt.s32.totalorder %v495, 2
    %vm497 = vcmp.eq.s32.totalorder %v495, 0
    %v498 = vxor.u32 %v492, 2147483648
    %v499 = vsel %vm497, %v491, %v498
    %vm500 = vcmp.eq.s32.totalorder %v495, 2
    %v501 = vxor.u32 %v491, 2147483648
    %v502 = vsel %vm500, %v501, %v492
    %v503 = vsel %vm496, %v499, %v502
    %v504 = vsel %vm493, nan, %v503
    %v505 = vmul.f32 %v16, %v504
    %v506 = vadd.f32 %v399, %v505
    %vm507 = vcmask 64512
    %v508 = vsel %vm507, %v506, 0.0
    %v509 = vrot.slane %v508, 4
    %v510 = vadd.f32 %v508, %v509
    %v511 = vrot.slane %v510, 2
    %v512 = vadd.f32 %v510, %v511
    %v513 = vrot.slane %v512, 1
    %v514 = vadd.f32 %v512, %v513
    %v515 = vsub.f32 0.0, %v514
    %516 = vadd.xlane.f32.xlu0 %v508
    %v517 = vpop.xlane.xlu0 %516
    %v518 = vsub.f32 %v281, %v515
    %v519 = vmul.f32 %v518, 0.02
    %v520 = vsub.f32 %v284, %v517
    %v521 = vmul.f32 %v520, 0.02
    %v522 = vmul.f32 %v519, 0.5
    %v523 = vadd.f32 %v11, %v522
    %v524 = vmul.f32 %v521, 0.5
    %v525 = vadd.f32 %v18, %v524
    %527 = vset.pattern.permute.xlu0 0
    %528 = vperm.xlu0 %527, %v525
    %v529 = vpop.permute.xlu0 %528
    %v531 = vlaneseq
    %v532 = vshrl.u32 %v531, 7
    %v533 = vsub.s32 0, %v532
    %v534 = vrot.slane %v523, %v533
    %v535 = vsub.f32 %v529, %v534
    %v536 = vand.u32 2147483647, %v535
    %vm537 = vcmp.le.f32.partialorder %v536, 0.7853982
    %vm538 = vcmp.lt.s32.totalorder %v535, 0
    %v539 = vand.u32 %v535, 2139095040
    %v540 = vshrl.u32 %v539, 23
    %v541 = vsub.s32 %v540, 127
    %v542 = vand.u32 2147483647, %v535
    %v543 = vand.u32 %v542, 8388607
    %v544 = vor.u32 %v543, 8388608
    %v545 = vsub.s32 0, %v544
    %v546 = vadd.s32 %v541, 1
    %vm547 = vcmp.gt.s32.totalorder %v546, 0
    %v548 = vsel %vm547, %v546, 0
    %v549 = vshrl.u32 %v548, 5
    %v550 = vand.u32 %v548, 31
    %v551 = vsub.s32 32, %v550
    %v552 = vshrl.u32 683565275, %v551
    %v553 = vshll.u32 683565275, %v550
    %v554 = vshrl.u32 2475754826, %v551
    %v555 = vor.u32 %v553, %v554
    %v556 = vshll.u32 2475754826, %v550
    %v557 = vshrl.u32 2131351028, %v551
    %v558 = vor.u32 %v556, %v557
    %v559 = vshll.u32 2131351028, %v550
    %v560 = vshrl.u32 2102212464, %v551
    %v561 = vor.u32 %v559, %v560
    %v562 = vshll.u32 2102212464, %v550
    %v563 = vshrl.u32 920167782, %v551
    %v564 = vor.u32 %v562, %v563
    %v565 = vshll.u32 920167782, %v550
    %v566 = vshrl.u32 1326507024, %v551
    %v567 = vor.u32 %v565, %v566
    %vm568 = vcmp.lt.s32.totalorder %v549, 1
    %vm569 = vcmp.lt.s32.totalorder %v549, 2
    %vm570 = vcmp.lt.s32.totalorder %v549, 3
    %vm571 = vcmp.lt.s32.totalorder %v549, 4
    %v572 = vsel %vm568, %v552, %v555
    %v573 = vsel %vm571, %v561, 2102212464
    %v574 = vsel %vm570, %v558, %v573
    %v575 = vsel %vm569, %v572, %v574
    %v576 = vsel %vm568, %v555, %v558
    %v577 = vsel %vm571, %v564, 920167782
    %v578 = vsel %vm570, %v561, %v577
    %v579 = vsel %vm569, %v576, %v578
    %v580 = vsel %vm568, %v558, %v561
    %v581 = vsel %vm571, %v567, 1326507024
    %v582 = vsel %vm570, %v564, %v581
    %v583 = vsel %vm569, %v580, %v582
    %v584 = vshll.u32 %v544, 8
    %v585 = vmul.u32.u64.compose %v584, %v583
    %v586 = vextract.low.u32 %v585
    %v587 = vextract.high.u32 %v585
    %v588 = vmul.u32.u64.compose %v584, %v579
    %v589 = vextract.low.u32 %v588
    %v590 = vextract.high.u32 %v588
    %v591 = vmul.u32 %v584, %v575
    %v592 = vadd.s32 %v587, %v589
    %vm593 = vc.u32 %v587, %v589
    %v594 = vadd.s32 %v590, 1
    %v595 = vsel %vm593, %v594, %v590
    %v596 = vadd.s32 %v591, %v595
    %v597 = vadd.s32 %v596, 536870912
    %v598 = vshrl.u32 %v597, 30
    %v599 = vshll.u32 %v598, 30
    %v600 = vsub.s32 %v596, %v599
    %vm601 = vcmp.lt.s32.totalorder %v600, 0
    %v602 = vsub.s32 0, %v600
    %v603 = vsel %vm601, %v602, %v600
    %v604 = vclz %v603
    %v605 = vsub.s32 %v604, 2
    %vm606 = vcmp.gt.s32.totalorder 0, %v605
    %v607 = vsel %vm606, 0, %v605
    %v608 = vsub.s32 32, %v607
    %v609 = vshll.u32 %v600, %v607
    %v610 = vshrl.u32 %v592, %v608
    %v611 = vor.u32 %v609, %v610
    %v612 = vsub.s32 4294967266, %v607
    %v613 = vadd.s32 %v612, 127
    %v614 = vshll.u32 %v613, 23
    %v615 = vor.u32 4788187, %v614
    %v616 = vand.u32 2147483647, %v615
    %v618 = vcvt.s32.f32 %v611
    %v619 = vmul.f32 %v618, %v616
    %v620 = vxor.u32 %v619, 2147483648
    %v621 = vsel %vm538, %v620, %v619
    %v622 = vsub.s32 4, %v598
    %v623 = vsel %vm538, %v622, %v598
    %v624 = vsel %vm537, %v535, %v621
    %v625 = vsel %vm537, 0, %v623
    %v626 = vcosq.f32.pop %v624
    %v627 = vsinq.f32.pop %v624
    %vm628 = vweird.f32 %v535
    %v629 = vadd.s32 %v625, 3
    %v630 = vand.u32 %v629, 3
    %vm631 = vcmp.lt.s32.totalorder %v630, 2
    %vm632 = vcmp.eq.s32.totalorder %v630, 0
    %v633 = vxor.u32 %v627, 2147483648
    %v634 = vsel %vm632, %v626, %v633
    %vm635 = vcmp.eq.s32.totalorder %v630, 2
    %v636 = vxor.u32 %v626, 2147483648
    %v637 = vsel %vm635, %v636, %v627
    %v638 = vsel %vm631, %v634, %v637
    %v639 = vsel %vm628, nan, %v638
    %v640 = vmul.f32 %v15, %v639
    %v641 = vmul.f32 %v535, 2.0
    %v642 = vand.u32 2147483647, %v641
    %vm643 = vcmp.le.f32.partialorder %v642, 0.7853982
    %vm644 = vcmp.lt.s32.totalorder %v641, 0
    %v645 = vand.u32 %v641, 2139095040
    %v646 = vshrl.u32 %v645, 23
    %v647 = vsub.s32 %v646, 127
    %v648 = vand.u32 2147483647, %v641
    %v649 = vand.u32 %v648, 8388607
    %v650 = vor.u32 %v649, 8388608
    %v651 = vsub.s32 0, %v650
    %v652 = vadd.s32 %v647, 1
    %vm653 = vcmp.gt.s32.totalorder %v652, 0
    %v654 = vsel %vm653, %v652, 0
    %v655 = vshrl.u32 %v654, 5
    %v656 = vand.u32 %v654, 31
    %v657 = vsub.s32 32, %v656
    %v658 = vshrl.u32 683565275, %v657
    %v659 = vshll.u32 683565275, %v656
    %v660 = vshrl.u32 2475754826, %v657
    %v661 = vor.u32 %v659, %v660
    %v662 = vshll.u32 2475754826, %v656
    %v663 = vshrl.u32 2131351028, %v657
    %v664 = vor.u32 %v662, %v663
    %v665 = vshll.u32 2131351028, %v656
    %v666 = vshrl.u32 2102212464, %v657
    %v667 = vor.u32 %v665, %v666
    %v668 = vshll.u32 2102212464, %v656
    %v669 = vshrl.u32 920167782, %v657
    %v670 = vor.u32 %v668, %v669
    %v671 = vshll.u32 920167782, %v656
    %v672 = vshrl.u32 1326507024, %v657
    %v673 = vor.u32 %v671, %v672
    %vm674 = vcmp.lt.s32.totalorder %v655, 1
    %vm675 = vcmp.lt.s32.totalorder %v655, 2
    %vm676 = vcmp.lt.s32.totalorder %v655, 3
    %vm677 = vcmp.lt.s32.totalorder %v655, 4
    %v678 = vsel %vm674, %v658, %v661
    %v679 = vsel %vm677, %v667, 2102212464
    %v680 = vsel %vm676, %v664, %v679
    %v681 = vsel %vm675, %v678, %v680
    %v682 = vsel %vm674, %v661, %v664
    %v683 = vsel %vm677, %v670, 920167782
    %v684 = vsel %vm676, %v667, %v683
    %v685 = vsel %vm675, %v682, %v684
    %v686 = vsel %vm674, %v664, %v667
    %v687 = vsel %vm677, %v673, 1326507024
    %v688 = vsel %vm676, %v670, %v687
    %v689 = vsel %vm675, %v686, %v688
    %v690 = vshll.u32 %v650, 8
    %v691 = vmul.u32.u64.compose %v690, %v689
    %v692 = vextract.low.u32 %v691
    %v693 = vextract.high.u32 %v691
    %v694 = vmul.u32.u64.compose %v690, %v685
    %v695 = vextract.low.u32 %v694
    %v696 = vextract.high.u32 %v694
    %v697 = vmul.u32 %v690, %v681
    %v698 = vadd.s32 %v693, %v695
    %vm699 = vc.u32 %v693, %v695
    %v700 = vadd.s32 %v696, 1
    %v701 = vsel %vm699, %v700, %v696
    %v702 = vadd.s32 %v697, %v701
    %v703 = vadd.s32 %v702, 536870912
    %v704 = vshrl.u32 %v703, 30
    %v705 = vshll.u32 %v704, 30
    %v706 = vsub.s32 %v702, %v705
    %vm707 = vcmp.lt.s32.totalorder %v706, 0
    %v708 = vsub.s32 0, %v706
    %v709 = vsel %vm707, %v708, %v706
    %v710 = vclz %v709
    %v711 = vsub.s32 %v710, 2
    %vm712 = vcmp.gt.s32.totalorder 0, %v711
    %v713 = vsel %vm712, 0, %v711
    %v714 = vsub.s32 32, %v713
    %v715 = vshll.u32 %v706, %v713
    %v716 = vshrl.u32 %v698, %v714
    %v717 = vor.u32 %v715, %v716
    %v718 = vsub.s32 4294967266, %v713
    %v719 = vadd.s32 %v718, 127
    %v720 = vshll.u32 %v719, 23
    %v721 = vor.u32 4788187, %v720
    %v722 = vand.u32 2147483647, %v721
    %v724 = vcvt.s32.f32 %v717
    %v725 = vmul.f32 %v724, %v722
    %v726 = vxor.u32 %v725, 2147483648
    %v727 = vsel %vm644, %v726, %v725
    %v728 = vsub.s32 4, %v704
    %v729 = vsel %vm644, %v728, %v704
    %v730 = vsel %vm643, %v641, %v727
    %v731 = vsel %vm643, 0, %v729
    %v732 = vcosq.f32.pop %v730
    %v733 = vsinq.f32.pop %v730
    %vm734 = vweird.f32 %v641
    %v735 = vadd.s32 %v731, 3
    %v736 = vand.u32 %v735, 3
    %vm737 = vcmp.lt.s32.totalorder %v736, 2
    %vm738 = vcmp.eq.s32.totalorder %v736, 0
    %v739 = vxor.u32 %v733, 2147483648
    %v740 = vsel %vm738, %v732, %v739
    %vm741 = vcmp.eq.s32.totalorder %v736, 2
    %v742 = vxor.u32 %v732, 2147483648
    %v743 = vsel %vm741, %v742, %v733
    %v744 = vsel %vm737, %v740, %v743
    %v745 = vsel %vm734, nan, %v744
    %v746 = vmul.f32 %v16, %v745
    %v747 = vadd.f32 %v640, %v746
    %v748 = vsel %vm507, %v747, 0.0
    %v749 = vrot.slane %v748, 4
    %v750 = vadd.f32 %v748, %v749
    %v751 = vrot.slane %v750, 2
    %v752 = vadd.f32 %v750, %v751
    %v753 = vrot.slane %v752, 1
    %v754 = vadd.f32 %v752, %v753
    %v755 = vsub.f32 0.0, %v754
    %756 = vadd.xlane.f32.xlu0 %v748
    %v757 = vpop.xlane.xlu0 %756
    %v758 = vsub.f32 %v281, %v755
    %v759 = vmul.f32 %v758, 0.02
    %v760 = vsub.f32 %v284, %v757
    %v761 = vmul.f32 %v760, 0.02
    %v762 = vmul.f32 %v759, 0.5
    %v763 = vadd.f32 %v11, %v762
    %v764 = vmul.f32 %v761, 0.5
    %v765 = vadd.f32 %v18, %v764
    %767 = vset.pattern.permute.xlu0 0
    %768 = vperm.xlu0 %767, %v765
    %v769 = vpop.permute.xlu0 %768
    %v771 = vlaneseq
    %v772 = vshrl.u32 %v771, 7
    %v773 = vsub.s32 0, %v772
    %v774 = vrot.slane %v763, %v773
    %v775 = vsub.f32 %v769, %v774
    %v776 = vand.u32 2147483647, %v775
    %vm777 = vcmp.le.f32.partialorder %v776, 0.7853982
    %vm778 = vcmp.lt.s32.totalorder %v775, 0
    %v779 = vand.u32 %v775, 2139095040
    %v780 = vshrl.u32 %v779, 23
    %v781 = vsub.s32 %v780, 127
    %v782 = vand.u32 2147483647, %v775
    %v783 = vand.u32 %v782, 8388607
    %v784 = vor.u32 %v783, 8388608
    %v785 = vsub.s32 0, %v784
    %v786 = vadd.s32 %v781, 1
    %vm787 = vcmp.gt.s32.totalorder %v786, 0
    %v788 = vsel %vm787, %v786, 0
    %v789 = vshrl.u32 %v788, 5
    %v790 = vand.u32 %v788, 31
    %v791 = vsub.s32 32, %v790
    %v792 = vshrl.u32 683565275, %v791
    %v793 = vshll.u32 683565275, %v790
    %v794 = vshrl.u32 2475754826, %v791
    %v795 = vor.u32 %v793, %v794
    %v796 = vshll.u32 2475754826, %v790
    %v797 = vshrl.u32 2131351028, %v791
    %v798 = vor.u32 %v796, %v797
    %v799 = vshll.u32 2131351028, %v790
    %v800 = vshrl.u32 2102212464, %v791
    %v801 = vor.u32 %v799, %v800
    %v802 = vshll.u32 2102212464, %v790
    %v803 = vshrl.u32 920167782, %v791
    %v804 = vor.u32 %v802, %v803
    %v805 = vshll.u32 920167782, %v790
    %v806 = vshrl.u32 1326507024, %v791
    %v807 = vor.u32 %v805, %v806
    %vm808 = vcmp.lt.s32.totalorder %v789, 1
    %vm809 = vcmp.lt.s32.totalorder %v789, 2
    %vm810 = vcmp.lt.s32.totalorder %v789, 3
    %vm811 = vcmp.lt.s32.totalorder %v789, 4
    %v812 = vsel %vm808, %v792, %v795
    %v813 = vsel %vm811, %v801, 2102212464
    %v814 = vsel %vm810, %v798, %v813
    %v815 = vsel %vm809, %v812, %v814
    %v816 = vsel %vm808, %v795, %v798
    %v817 = vsel %vm811, %v804, 920167782
    %v818 = vsel %vm810, %v801, %v817
    %v819 = vsel %vm809, %v816, %v818
    %v820 = vsel %vm808, %v798, %v801
    %v821 = vsel %vm811, %v807, 1326507024
    %v822 = vsel %vm810, %v804, %v821
    %v823 = vsel %vm809, %v820, %v822
    %v824 = vshll.u32 %v784, 8
    %v825 = vmul.u32.u64.compose %v824, %v823
    %v826 = vextract.low.u32 %v825
    %v827 = vextract.high.u32 %v825
    %v828 = vmul.u32.u64.compose %v824, %v819
    %v829 = vextract.low.u32 %v828
    %v830 = vextract.high.u32 %v828
    %v831 = vmul.u32 %v824, %v815
    %v832 = vadd.s32 %v827, %v829
    %vm833 = vc.u32 %v827, %v829
    %v834 = vadd.s32 %v830, 1
    %v835 = vsel %vm833, %v834, %v830
    %v836 = vadd.s32 %v831, %v835
    %v837 = vadd.s32 %v836, 536870912
    %v838 = vshrl.u32 %v837, 30
    %v839 = vshll.u32 %v838, 30
    %v840 = vsub.s32 %v836, %v839
    %vm841 = vcmp.lt.s32.totalorder %v840, 0
    %v842 = vsub.s32 0, %v840
    %v843 = vsel %vm841, %v842, %v840
    %v844 = vclz %v843
    %v845 = vsub.s32 %v844, 2
    %vm846 = vcmp.gt.s32.totalorder 0, %v845
    %v847 = vsel %vm846, 0, %v845
    %v848 = vsub.s32 32, %v847
    %v849 = vshll.u32 %v840, %v847
    %v850 = vshrl.u32 %v832, %v848
    %v851 = vor.u32 %v849, %v850
    %v852 = vsub.s32 4294967266, %v847
    %v853 = vadd.s32 %v852, 127
    %v854 = vshll.u32 %v853, 23
    %v855 = vor.u32 4788187, %v854
    %v856 = vand.u32 2147483647, %v855
    %v858 = vcvt.s32.f32 %v851
    %v859 = vmul.f32 %v858, %v856
    %v860 = vxor.u32 %v859, 2147483648
    %v861 = vsel %vm778, %v860, %v859
    %v862 = vsub.s32 4, %v838
    %v863 = vsel %vm778, %v862, %v838
    %v864 = vsel %vm777, %v775, %v861
    %v865 = vsel %vm777, 0, %v863
    %v866 = vcosq.f32.pop %v864
    %v867 = vsinq.f32.pop %v864
    %vm868 = vweird.f32 %v775
    %v869 = vadd.s32 %v865, 3
    %v870 = vand.u32 %v869, 3
    %vm871 = vcmp.lt.s32.totalorder %v870, 2
    %vm872 = vcmp.eq.s32.totalorder %v870, 0
    %v873 = vxor.u32 %v867, 2147483648
    %v874 = vsel %vm872, %v866, %v873
    %vm875 = vcmp.eq.s32.totalorder %v870, 2
    %v876 = vxor.u32 %v866, 2147483648
    %v877 = vsel %vm875, %v876, %v867
    %v878 = vsel %vm871, %v874, %v877
    %v879 = vsel %vm868, nan, %v878
    %v880 = vmul.f32 %v15, %v879
    %v881 = vmul.f32 %v775, 2.0
    %v882 = vand.u32 2147483647, %v881
    %vm883 = vcmp.le.f32.partialorder %v882, 0.7853982
    %vm884 = vcmp.lt.s32.totalorder %v881, 0
    %v885 = vand.u32 %v881, 2139095040
    %v886 = vshrl.u32 %v885, 23
    %v887 = vsub.s32 %v886, 127
    %v888 = vand.u32 2147483647, %v881
    %v889 = vand.u32 %v888, 8388607
    %v890 = vor.u32 %v889, 8388608
    %v891 = vsub.s32 0, %v890
    %v892 = vadd.s32 %v887, 1
    %vm893 = vcmp.gt.s32.totalorder %v892, 0
    %v894 = vsel %vm893, %v892, 0
    %v895 = vshrl.u32 %v894, 5
    %v896 = vand.u32 %v894, 31
    %v897 = vsub.s32 32, %v896
    %v898 = vshrl.u32 683565275, %v897
    %v899 = vshll.u32 683565275, %v896
    %v900 = vshrl.u32 2475754826, %v897
    %v901 = vor.u32 %v899, %v900
    %v902 = vshll.u32 2475754826, %v896
    %v903 = vshrl.u32 2131351028, %v897
    %v904 = vor.u32 %v902, %v903
    %v905 = vshll.u32 2131351028, %v896
    %v906 = vshrl.u32 2102212464, %v897
    %v907 = vor.u32 %v905, %v906
    %v908 = vshll.u32 2102212464, %v896
    %v909 = vshrl.u32 920167782, %v897
    %v910 = vor.u32 %v908, %v909
    %v911 = vshll.u32 920167782, %v896
    %v912 = vshrl.u32 1326507024, %v897
    %v913 = vor.u32 %v911, %v912
    %vm914 = vcmp.lt.s32.totalorder %v895, 1
    %vm915 = vcmp.lt.s32.totalorder %v895, 2
    %vm916 = vcmp.lt.s32.totalorder %v895, 3
    %vm917 = vcmp.lt.s32.totalorder %v895, 4
    %v918 = vsel %vm914, %v898, %v901
    %v919 = vsel %vm917, %v907, 2102212464
    %v920 = vsel %vm916, %v904, %v919
    %v921 = vsel %vm915, %v918, %v920
    %v922 = vsel %vm914, %v901, %v904
    %v923 = vsel %vm917, %v910, 920167782
    %v924 = vsel %vm916, %v907, %v923
    %v925 = vsel %vm915, %v922, %v924
    %v926 = vsel %vm914, %v904, %v907
    %v927 = vsel %vm917, %v913, 1326507024
    %v928 = vsel %vm916, %v910, %v927
    %v929 = vsel %vm915, %v926, %v928
    %v930 = vshll.u32 %v890, 8
    %v931 = vmul.u32.u64.compose %v930, %v929
    %v932 = vextract.low.u32 %v931
    %v933 = vextract.high.u32 %v931
    %v934 = vmul.u32.u64.compose %v930, %v925
    %v935 = vextract.low.u32 %v934
    %v936 = vextract.high.u32 %v934
    %v937 = vmul.u32 %v930, %v921
    %v938 = vadd.s32 %v933, %v935
    %vm939 = vc.u32 %v933, %v935
    %v940 = vadd.s32 %v936, 1
    %v941 = vsel %vm939, %v940, %v936
    %v942 = vadd.s32 %v937, %v941
    %v943 = vadd.s32 %v942, 536870912
    %v944 = vshrl.u32 %v943, 30
    %v945 = vshll.u32 %v944, 30
    %v946 = vsub.s32 %v942, %v945
    %vm947 = vcmp.lt.s32.totalorder %v946, 0
    %v948 = vsub.s32 0, %v946
    %v949 = vsel %vm947, %v948, %v946
    %v950 = vclz %v949
    %v951 = vsub.s32 %v950, 2
    %vm952 = vcmp.gt.s32.totalorder 0, %v951
    %v953 = vsel %vm952, 0, %v951
    %v954 = vsub.s32 32, %v953
    %v955 = vshll.u32 %v946, %v953
    %v956 = vshrl.u32 %v938, %v954
    %v957 = vor.u32 %v955, %v956
    %v958 = vsub.s32 4294967266, %v953
    %v959 = vadd.s32 %v958, 127
    %v960 = vshll.u32 %v959, 23
    %v961 = vor.u32 4788187, %v960
    %v962 = vand.u32 2147483647, %v961
    %v964 = vcvt.s32.f32 %v957
    %v965 = vmul.f32 %v964, %v962
    %v966 = vxor.u32 %v965, 2147483648
    %v967 = vsel %vm884, %v966, %v965
    %v968 = vsub.s32 4, %v944
    %v969 = vsel %vm884, %v968, %v944
    %v970 = vsel %vm883, %v881, %v967
    %v971 = vsel %vm883, 0, %v969
    %v972 = vcosq.f32.pop %v970
    %v973 = vsinq.f32.pop %v970
    %vm974 = vweird.f32 %v881
    %v975 = vadd.s32 %v971, 3
    %v976 = vand.u32 %v975, 3
    %vm977 = vcmp.lt.s32.totalorder %v976, 2
    %vm978 = vcmp.eq.s32.totalorder %v976, 0
    %v979 = vxor.u32 %v973, 2147483648
    %v980 = vsel %vm978, %v972, %v979
    %vm981 = vcmp.eq.s32.totalorder %v976, 2
    %v982 = vxor.u32 %v972, 2147483648
    %v983 = vsel %vm981, %v982, %v973
    %v984 = vsel %vm977, %v980, %v983
    %v985 = vsel %vm974, nan, %v984
    %v986 = vmul.f32 %v16, %v985
    %v987 = vadd.f32 %v880, %v986
    %v988 = vsel %vm507, %v987, 0.0
    %v989 = vrot.slane %v988, 4
    %v990 = vadd.f32 %v988, %v989
    %v991 = vrot.slane %v990, 2
    %v992 = vadd.f32 %v990, %v991
    %v993 = vrot.slane %v992, 1
    %v994 = vadd.f32 %v992, %v993
    %v995 = vsub.f32 0.0, %v994
    %996 = vadd.xlane.f32.xlu0 %v988
    %v997 = vpop.xlane.xlu0 %996
    %v998 = vsub.f32 %v281, %v995
    %v999 = vmul.f32 %v998, 0.02
    %v1000 = vsub.f32 %v284, %v997
    %v1001 = vmul.f32 %v1000, 0.02
    %v1002 = vadd.f32 %v11, %v999
    %v1003 = vadd.f32 %v18, %v1001
    %1005 = vset.pattern.permute.xlu0 0
    %1006 = vperm.xlu0 %1005, %v1003
    %v1007 = vpop.permute.xlu0 %1006
    %v1009 = vlaneseq
    %v1010 = vshrl.u32 %v1009, 7
    %v1011 = vsub.s32 0, %v1010
    %v1012 = vrot.slane %v1002, %v1011
    %v1013 = vsub.f32 %v1007, %v1012
    %v1014 = vand.u32 2147483647, %v1013
    %vm1015 = vcmp.le.f32.partialorder %v1014, 0.7853982
    %vm1016 = vcmp.lt.s32.totalorder %v1013, 0
    %v1017 = vand.u32 %v1013, 2139095040
    %v1018 = vshrl.u32 %v1017, 23
    %v1019 = vsub.s32 %v1018, 127
    %v1020 = vand.u32 2147483647, %v1013
    %v1021 = vand.u32 %v1020, 8388607
    %v1022 = vor.u32 %v1021, 8388608
    %v1023 = vsub.s32 0, %v1022
    %v1024 = vadd.s32 %v1019, 1
    %vm1025 = vcmp.gt.s32.totalorder %v1024, 0
    %v1026 = vsel %vm1025, %v1024, 0
    %v1027 = vshrl.u32 %v1026, 5
    %v1028 = vand.u32 %v1026, 31
    %v1029 = vsub.s32 32, %v1028
    %v1030 = vshrl.u32 683565275, %v1029
    %v1031 = vshll.u32 683565275, %v1028
    %v1032 = vshrl.u32 2475754826, %v1029
    %v1033 = vor.u32 %v1031, %v1032
    %v1034 = vshll.u32 2475754826, %v1028
    %v1035 = vshrl.u32 2131351028, %v1029
    %v1036 = vor.u32 %v1034, %v1035
    %v1037 = vshll.u32 2131351028, %v1028
    %v1038 = vshrl.u32 2102212464, %v1029
    %v1039 = vor.u32 %v1037, %v1038
    %v1040 = vshll.u32 2102212464, %v1028
    %v1041 = vshrl.u32 920167782, %v1029
    %v1042 = vor.u32 %v1040, %v1041
    %v1043 = vshll.u32 920167782, %v1028
    %v1044 = vshrl.u32 1326507024, %v1029
    %v1045 = vor.u32 %v1043, %v1044
    %vm1046 = vcmp.lt.s32.totalorder %v1027, 1
    %vm1047 = vcmp.lt.s32.totalorder %v1027, 2
    %vm1048 = vcmp.lt.s32.totalorder %v1027, 3
    %vm1049 = vcmp.lt.s32.totalorder %v1027, 4
    %v1050 = vsel %vm1046, %v1030, %v1033
    %v1051 = vsel %vm1049, %v1039, 2102212464
    %v1052 = vsel %vm1048, %v1036, %v1051
    %v1053 = vsel %vm1047, %v1050, %v1052
    %v1054 = vsel %vm1046, %v1033, %v1036
    %v1055 = vsel %vm1049, %v1042, 920167782
    %v1056 = vsel %vm1048, %v1039, %v1055
    %v1057 = vsel %vm1047, %v1054, %v1056
    %v1058 = vsel %vm1046, %v1036, %v1039
    %v1059 = vsel %vm1049, %v1045, 1326507024
    %v1060 = vsel %vm1048, %v1042, %v1059
    %v1061 = vsel %vm1047, %v1058, %v1060
    %v1062 = vshll.u32 %v1022, 8
    %v1063 = vmul.u32.u64.compose %v1062, %v1061
    %v1064 = vextract.low.u32 %v1063
    %v1065 = vextract.high.u32 %v1063
    %v1066 = vmul.u32.u64.compose %v1062, %v1057
    %v1067 = vextract.low.u32 %v1066
    %v1068 = vextract.high.u32 %v1066
    %v1069 = vmul.u32 %v1062, %v1053
    %v1070 = vadd.s32 %v1065, %v1067
    %vm1071 = vc.u32 %v1065, %v1067
    %v1072 = vadd.s32 %v1068, 1
    %v1073 = vsel %vm1071, %v1072, %v1068
    %v1074 = vadd.s32 %v1069, %v1073
    %v1075 = vadd.s32 %v1074, 536870912
    %v1076 = vshrl.u32 %v1075, 30
    %v1077 = vshll.u32 %v1076, 30
    %v1078 = vsub.s32 %v1074, %v1077
    %vm1079 = vcmp.lt.s32.totalorder %v1078, 0
    %v1080 = vsub.s32 0, %v1078
    %v1081 = vsel %vm1079, %v1080, %v1078
    %v1082 = vclz %v1081
    %v1083 = vsub.s32 %v1082, 2
    %vm1084 = vcmp.gt.s32.totalorder 0, %v1083
    %v1085 = vsel %vm1084, 0, %v1083
    %v1086 = vsub.s32 32, %v1085
    %v1087 = vshll.u32 %v1078, %v1085
    %v1088 = vshrl.u32 %v1070, %v1086
    %v1089 = vor.u32 %v1087, %v1088
    %v1090 = vsub.s32 4294967266, %v1085
    %v1091 = vadd.s32 %v1090, 127
    %v1092 = vshll.u32 %v1091, 23
    %v1093 = vor.u32 4788187, %v1092
    %v1094 = vand.u32 2147483647, %v1093
    %v1096 = vcvt.s32.f32 %v1089
    %v1097 = vmul.f32 %v1096, %v1094
    %v1098 = vxor.u32 %v1097, 2147483648
    %v1099 = vsel %vm1016, %v1098, %v1097
    %v1100 = vsub.s32 4, %v1076
    %v1101 = vsel %vm1016, %v1100, %v1076
    %v1102 = vsel %vm1015, %v1013, %v1099
    %v1103 = vsel %vm1015, 0, %v1101
    %v1104 = vcosq.f32.pop %v1102
    %v1105 = vsinq.f32.pop %v1102
    %vm1106 = vweird.f32 %v1013
    %v1107 = vadd.s32 %v1103, 3
    %v1108 = vand.u32 %v1107, 3
    %vm1109 = vcmp.lt.s32.totalorder %v1108, 2
    %vm1110 = vcmp.eq.s32.totalorder %v1108, 0
    %v1111 = vxor.u32 %v1105, 2147483648
    %v1112 = vsel %vm1110, %v1104, %v1111
    %vm1113 = vcmp.eq.s32.totalorder %v1108, 2
    %v1114 = vxor.u32 %v1104, 2147483648
    %v1115 = vsel %vm1113, %v1114, %v1105
    %v1116 = vsel %vm1109, %v1112, %v1115
    %v1117 = vsel %vm1106, nan, %v1116
    %v1118 = vmul.f32 %v15, %v1117
    %v1119 = vmul.f32 %v1013, 2.0
    %v1120 = vand.u32 2147483647, %v1119
    %vm1121 = vcmp.le.f32.partialorder %v1120, 0.7853982
    %vm1122 = vcmp.lt.s32.totalorder %v1119, 0
    %v1123 = vand.u32 %v1119, 2139095040
    %v1124 = vshrl.u32 %v1123, 23
    %v1125 = vsub.s32 %v1124, 127
    %v1126 = vand.u32 2147483647, %v1119
    %v1127 = vand.u32 %v1126, 8388607
    %v1128 = vor.u32 %v1127, 8388608
    %v1129 = vsub.s32 0, %v1128
    %v1130 = vadd.s32 %v1125, 1
    %vm1131 = vcmp.gt.s32.totalorder %v1130, 0
    %v1132 = vsel %vm1131, %v1130, 0
    %v1133 = vshrl.u32 %v1132, 5
    %v1134 = vand.u32 %v1132, 31
    %v1135 = vsub.s32 32, %v1134
    %v1136 = vshrl.u32 683565275, %v1135
    %v1137 = vshll.u32 683565275, %v1134
    %v1138 = vshrl.u32 2475754826, %v1135
    %v1139 = vor.u32 %v1137, %v1138
    %v1140 = vshll.u32 2475754826, %v1134
    %v1141 = vshrl.u32 2131351028, %v1135
    %v1142 = vor.u32 %v1140, %v1141
    %v1143 = vshll.u32 2131351028, %v1134
    %v1144 = vshrl.u32 2102212464, %v1135
    %v1145 = vor.u32 %v1143, %v1144
    %v1146 = vshll.u32 2102212464, %v1134
    %v1147 = vshrl.u32 920167782, %v1135
    %v1148 = vor.u32 %v1146, %v1147
    %v1149 = vshll.u32 920167782, %v1134
    %v1150 = vshrl.u32 1326507024, %v1135
    %v1151 = vor.u32 %v1149, %v1150
    %vm1152 = vcmp.lt.s32.totalorder %v1133, 1
    %vm1153 = vcmp.lt.s32.totalorder %v1133, 2
    %vm1154 = vcmp.lt.s32.totalorder %v1133, 3
    %vm1155 = vcmp.lt.s32.totalorder %v1133, 4
    %v1156 = vsel %vm1152, %v1136, %v1139
    %v1157 = vsel %vm1155, %v1145, 2102212464
    %v1158 = vsel %vm1154, %v1142, %v1157
    %v1159 = vsel %vm1153, %v1156, %v1158
    %v1160 = vsel %vm1152, %v1139, %v1142
    %v1161 = vsel %vm1155, %v1148, 920167782
    %v1162 = vsel %vm1154, %v1145, %v1161
    %v1163 = vsel %vm1153, %v1160, %v1162
    %v1164 = vsel %vm1152, %v1142, %v1145
    %v1165 = vsel %vm1155, %v1151, 1326507024
    %v1166 = vsel %vm1154, %v1148, %v1165
    %v1167 = vsel %vm1153, %v1164, %v1166
    %v1168 = vshll.u32 %v1128, 8
    %v1169 = vmul.u32.u64.compose %v1168, %v1167
    %v1170 = vextract.low.u32 %v1169
    %v1171 = vextract.high.u32 %v1169
    %v1172 = vmul.u32.u64.compose %v1168, %v1163
    %v1173 = vextract.low.u32 %v1172
    %v1174 = vextract.high.u32 %v1172
    %v1175 = vmul.u32 %v1168, %v1159
    %v1176 = vadd.s32 %v1171, %v1173
    %vm1177 = vc.u32 %v1171, %v1173
    %v1178 = vadd.s32 %v1174, 1
    %v1179 = vsel %vm1177, %v1178, %v1174
    %v1180 = vadd.s32 %v1175, %v1179
    %v1181 = vadd.s32 %v1180, 536870912
    %v1182 = vshrl.u32 %v1181, 30
    %v1183 = vshll.u32 %v1182, 30
    %v1184 = vsub.s32 %v1180, %v1183
    %vm1185 = vcmp.lt.s32.totalorder %v1184, 0
    %v1186 = vsub.s32 0, %v1184
    %v1187 = vsel %vm1185, %v1186, %v1184
    %v1188 = vclz %v1187
    %v1189 = vsub.s32 %v1188, 2
    %vm1190 = vcmp.gt.s32.totalorder 0, %v1189
    %v1191 = vsel %vm1190, 0, %v1189
    %v1192 = vsub.s32 32, %v1191
    %v1193 = vshll.u32 %v1184, %v1191
    %v1194 = vshrl.u32 %v1176, %v1192
    %v1195 = vor.u32 %v1193, %v1194
    %v1196 = vsub.s32 4294967266, %v1191
    %v1197 = vadd.s32 %v1196, 127
    %v1198 = vshll.u32 %v1197, 23
    %v1199 = vor.u32 4788187, %v1198
    %v1200 = vand.u32 2147483647, %v1199
    %v1202 = vcvt.s32.f32 %v1195
    %v1203 = vmul.f32 %v1202, %v1200
    %v1204 = vxor.u32 %v1203, 2147483648
    %v1205 = vsel %vm1122, %v1204, %v1203
    %v1206 = vsub.s32 4, %v1182
    %v1207 = vsel %vm1122, %v1206, %v1182
    %v1208 = vsel %vm1121, %v1119, %v1205
    %v1209 = vsel %vm1121, 0, %v1207
    %v1210 = vcosq.f32.pop %v1208
    %v1211 = vsinq.f32.pop %v1208
    %vm1212 = vweird.f32 %v1119
    %v1213 = vadd.s32 %v1209, 3
    %v1214 = vand.u32 %v1213, 3
    %vm1215 = vcmp.lt.s32.totalorder %v1214, 2
    %vm1216 = vcmp.eq.s32.totalorder %v1214, 0
    %v1217 = vxor.u32 %v1211, 2147483648
    %v1218 = vsel %vm1216, %v1210, %v1217
    %vm1219 = vcmp.eq.s32.totalorder %v1214, 2
    %v1220 = vxor.u32 %v1210, 2147483648
    %v1221 = vsel %vm1219, %v1220, %v1211
    %v1222 = vsel %vm1215, %v1218, %v1221
    %v1223 = vsel %vm1212, nan, %v1222
    %v1224 = vmul.f32 %v16, %v1223
    %v1225 = vadd.f32 %v1118, %v1224
    %v1226 = vsel %vm507, %v1225, 0.0
    %v1227 = vrot.slane %v1226, 4
    %v1228 = vadd.f32 %v1226, %v1227
    %v1229 = vrot.slane %v1228, 2
    %v1230 = vadd.f32 %v1228, %v1229
    %v1231 = vrot.slane %v1230, 1
    %v1232 = vadd.f32 %v1230, %v1231
    %v1233 = vsub.f32 0.0, %v1232
    %v1234 = vsub.f32 %v281, %v1233
    %v1235 = vmul.f32 %v1234, 0.02
    %v1236 = vmul.f32 %v759, 2.0
    %v1237 = vadd.f32 %v519, %v1236
    %v1238 = vmul.f32 %v999, 2.0
    %v1239 = vadd.f32 %v1237, %v1238
    %v1240 = vadd.f32 %v1239, %v1235
    %v1241 = vmul.f32 %v1240, 0.16666667
    %v1242 = vadd.f32 %v11, %v1241
    %1243 = vst.msk [vmem:[%s2] sm:$0x1] %vm27, %v1242
    %vm1244 = vcmp.eq.s32.totalorder %v21, 2
    %v1245 = vsel %vm1244, 1.0, 0.0
    %vm1246 = vcmp.eq.s32.totalorder %v21, 3
    %v1247 = vsel %vm1246, 1.0, 0.0
    %v1248 = vsub.f32 %v1245, %v1247
    %v1249 = vmul.f32 %v1242, %v1248
    %v1250 = vsel %vm27, %v1249, 0.0
    %1251 = vadd.xlane.f32.xlu0 %v1250
    %v1252 = vpop.xlane.xlu0 %1251
    %v1253 = vrot.slane %v1252, 4
    %v1254 = vadd.f32 %v1252, %v1253
    %v1255 = vrot.slane %v1254, 2
    %v1256 = vadd.f32 %v1254, %v1255
    %v1257 = vrot.slane %v1256, 1
    %v1258 = vadd.f32 %v1256, %v1257
    %s1259 = vtos %v1258
    %v1260 = vadd.s32 %v21, 128
    %v1261 = vadd.s32 %v21, 256
    %v1262 = vcvt.s32.f32 %v21
    %v1263 = vcvt.s32.f32 %v1260
    %v1264 = vcvt.s32.f32 %v1261
    %v1265 = vmul.f32 %v1262, 0.01750191
    %v1266 = vmul.f32 %v1263, 0.01750191
    %v1267 = vmul.f32 %v1264, 0.01750191
    %v1268 = vstv %s1259
    %v1269 = vsub.f32 %v1268, %v1265
    %v1270 = vsub.f32 %v1268, %v1266
    %v1271 = vsub.f32 %v1268, %v1267
    %v1272 = vand.u32 2147483647, %v1269
    %vm1273 = vcmp.le.f32.partialorder %v1272, 0.7853982
    %vm1274 = vcmp.lt.s32.totalorder %v1269, 0
    %v1275 = vand.u32 %v1269, 2139095040
    %v1276 = vshrl.u32 %v1275, 23
    %v1277 = vsub.s32 %v1276, 127
    %v1278 = vand.u32 2147483647, %v1269
    %v1279 = vand.u32 %v1278, 8388607
    %v1280 = vor.u32 %v1279, 8388608
    %v1281 = vsub.s32 0, %v1280
    %v1282 = vadd.s32 %v1277, 1
    %vm1283 = vcmp.gt.s32.totalorder %v1282, 0
    %v1284 = vsel %vm1283, %v1282, 0
    %v1285 = vshrl.u32 %v1284, 5
    %v1286 = vand.u32 %v1284, 31
    %v1287 = vsub.s32 32, %v1286
    %v1288 = vshrl.u32 683565275, %v1287
    %v1289 = vshll.u32 683565275, %v1286
    %v1290 = vshrl.u32 2475754826, %v1287
    %v1291 = vor.u32 %v1289, %v1290
    %v1292 = vshll.u32 2475754826, %v1286
    %v1293 = vshrl.u32 2131351028, %v1287
    %v1294 = vor.u32 %v1292, %v1293
    %v1295 = vshll.u32 2131351028, %v1286
    %v1296 = vshrl.u32 2102212464, %v1287
    %v1297 = vor.u32 %v1295, %v1296
    %v1298 = vshll.u32 2102212464, %v1286
    %v1299 = vshrl.u32 920167782, %v1287
    %v1300 = vor.u32 %v1298, %v1299
    %v1301 = vshll.u32 920167782, %v1286
    %v1302 = vshrl.u32 1326507024, %v1287
    %v1303 = vor.u32 %v1301, %v1302
    %vm1304 = vcmp.lt.s32.totalorder %v1285, 1
    %vm1305 = vcmp.lt.s32.totalorder %v1285, 2
    %vm1306 = vcmp.lt.s32.totalorder %v1285, 3
    %vm1307 = vcmp.lt.s32.totalorder %v1285, 4
    %v1308 = vsel %vm1304, %v1288, %v1291
    %v1309 = vsel %vm1307, %v1297, 2102212464
    %v1310 = vsel %vm1306, %v1294, %v1309
    %v1311 = vsel %vm1305, %v1308, %v1310
    %v1312 = vsel %vm1304, %v1291, %v1294
    %v1313 = vsel %vm1307, %v1300, 920167782
    %v1314 = vsel %vm1306, %v1297, %v1313
    %v1315 = vsel %vm1305, %v1312, %v1314
    %v1316 = vsel %vm1304, %v1294, %v1297
    %v1317 = vsel %vm1307, %v1303, 1326507024
    %v1318 = vsel %vm1306, %v1300, %v1317
    %v1319 = vsel %vm1305, %v1316, %v1318
    %v1320 = vshll.u32 %v1280, 8
    %v1321 = vmul.u32.u64.compose %v1320, %v1319
    %v1322 = vextract.low.u32 %v1321
    %v1323 = vextract.high.u32 %v1321
    %v1324 = vmul.u32.u64.compose %v1320, %v1315
    %v1325 = vextract.low.u32 %v1324
    %v1326 = vextract.high.u32 %v1324
    %v1327 = vmul.u32 %v1320, %v1311
    %v1328 = vadd.s32 %v1323, %v1325
    %vm1329 = vc.u32 %v1323, %v1325
    %v1330 = vadd.s32 %v1326, 1
    %v1331 = vsel %vm1329, %v1330, %v1326
    %v1332 = vadd.s32 %v1327, %v1331
    %v1333 = vadd.s32 %v1332, 536870912
    %v1334 = vshrl.u32 %v1333, 30
    %v1335 = vshll.u32 %v1334, 30
    %v1336 = vsub.s32 %v1332, %v1335
    %vm1337 = vcmp.lt.s32.totalorder %v1336, 0
    %v1338 = vsub.s32 0, %v1336
    %v1339 = vsel %vm1337, %v1338, %v1336
    %v1340 = vclz %v1339
    %v1341 = vsub.s32 %v1340, 2
    %vm1342 = vcmp.gt.s32.totalorder 0, %v1341
    %v1343 = vsel %vm1342, 0, %v1341
    %v1344 = vsub.s32 32, %v1343
    %v1345 = vshll.u32 %v1336, %v1343
    %v1346 = vshrl.u32 %v1328, %v1344
    %v1347 = vor.u32 %v1345, %v1346
    %v1348 = vsub.s32 4294967266, %v1343
    %v1349 = vadd.s32 %v1348, 127
    %v1350 = vshll.u32 %v1349, 23
    %v1351 = vor.u32 4788187, %v1350
    %v1352 = vand.u32 2147483647, %v1351
    %v1354 = vcvt.s32.f32 %v1347
    %v1355 = vmul.f32 %v1354, %v1352
    %v1356 = vxor.u32 %v1355, 2147483648
    %v1357 = vsel %vm1274, %v1356, %v1355
    %v1358 = vsub.s32 4, %v1334
    %v1359 = vsel %vm1274, %v1358, %v1334
    %v1360 = vsel %vm1273, %v1269, %v1357
    %v1361 = vsel %vm1273, 0, %v1359
    %v1362 = vcosq.f32.pop %v1360
    %v1363 = vsinq.f32.pop %v1360
    %vm1364 = vweird.f32 %v1269
    %v1365 = vand.u32 %v1361, 3
    %vm1366 = vcmp.lt.s32.totalorder %v1365, 2
    %vm1367 = vcmp.eq.s32.totalorder %v1365, 0
    %v1368 = vxor.u32 %v1363, 2147483648
    %v1369 = vsel %vm1367, %v1362, %v1368
    %vm1370 = vcmp.eq.s32.totalorder %v1365, 2
    %v1371 = vxor.u32 %v1362, 2147483648
    %v1372 = vsel %vm1370, %v1371, %v1363
    %v1373 = vsel %vm1366, %v1369, %v1372
    %v1374 = vsel %vm1364, nan, %v1373
    %v1375 = vand.u32 2147483647, %v1270
    %vm1376 = vcmp.le.f32.partialorder %v1375, 0.7853982
    %vm1377 = vcmp.lt.s32.totalorder %v1270, 0
    %v1378 = vand.u32 %v1270, 2139095040
    %v1379 = vshrl.u32 %v1378, 23
    %v1380 = vsub.s32 %v1379, 127
    %v1381 = vand.u32 2147483647, %v1270
    %v1382 = vand.u32 %v1381, 8388607
    %v1383 = vor.u32 %v1382, 8388608
    %v1384 = vsub.s32 0, %v1383
    %v1385 = vadd.s32 %v1380, 1
    %vm1386 = vcmp.gt.s32.totalorder %v1385, 0
    %v1387 = vsel %vm1386, %v1385, 0
    %v1388 = vshrl.u32 %v1387, 5
    %v1389 = vand.u32 %v1387, 31
    %v1390 = vsub.s32 32, %v1389
    %v1391 = vshrl.u32 683565275, %v1390
    %v1392 = vshll.u32 683565275, %v1389
    %v1393 = vshrl.u32 2475754826, %v1390
    %v1394 = vor.u32 %v1392, %v1393
    %v1395 = vshll.u32 2475754826, %v1389
    %v1396 = vshrl.u32 2131351028, %v1390
    %v1397 = vor.u32 %v1395, %v1396
    %v1398 = vshll.u32 2131351028, %v1389
    %v1399 = vshrl.u32 2102212464, %v1390
    %v1400 = vor.u32 %v1398, %v1399
    %v1401 = vshll.u32 2102212464, %v1389
    %v1402 = vshrl.u32 920167782, %v1390
    %v1403 = vor.u32 %v1401, %v1402
    %v1404 = vshll.u32 920167782, %v1389
    %v1405 = vshrl.u32 1326507024, %v1390
    %v1406 = vor.u32 %v1404, %v1405
    %vm1407 = vcmp.lt.s32.totalorder %v1388, 1
    %vm1408 = vcmp.lt.s32.totalorder %v1388, 2
    %vm1409 = vcmp.lt.s32.totalorder %v1388, 3
    %vm1410 = vcmp.lt.s32.totalorder %v1388, 4
    %v1411 = vsel %vm1407, %v1391, %v1394
    %v1412 = vsel %vm1410, %v1400, 2102212464
    %v1413 = vsel %vm1409, %v1397, %v1412
    %v1414 = vsel %vm1408, %v1411, %v1413
    %v1415 = vsel %vm1407, %v1394, %v1397
    %v1416 = vsel %vm1410, %v1403, 920167782
    %v1417 = vsel %vm1409, %v1400, %v1416
    %v1418 = vsel %vm1408, %v1415, %v1417
    %v1419 = vsel %vm1407, %v1397, %v1400
    %v1420 = vsel %vm1410, %v1406, 1326507024
    %v1421 = vsel %vm1409, %v1403, %v1420
    %v1422 = vsel %vm1408, %v1419, %v1421
    %v1423 = vshll.u32 %v1383, 8
    %v1424 = vmul.u32.u64.compose %v1423, %v1422
    %v1425 = vextract.low.u32 %v1424
    %v1426 = vextract.high.u32 %v1424
    %v1427 = vmul.u32.u64.compose %v1423, %v1418
    %v1428 = vextract.low.u32 %v1427
    %v1429 = vextract.high.u32 %v1427
    %v1430 = vmul.u32 %v1423, %v1414
    %v1431 = vadd.s32 %v1426, %v1428
    %vm1432 = vc.u32 %v1426, %v1428
    %v1433 = vadd.s32 %v1429, 1
    %v1434 = vsel %vm1432, %v1433, %v1429
    %v1435 = vadd.s32 %v1430, %v1434
    %v1436 = vadd.s32 %v1435, 536870912
    %v1437 = vshrl.u32 %v1436, 30
    %v1438 = vshll.u32 %v1437, 30
    %v1439 = vsub.s32 %v1435, %v1438
    %vm1440 = vcmp.lt.s32.totalorder %v1439, 0
    %v1441 = vsub.s32 0, %v1439
    %v1442 = vsel %vm1440, %v1441, %v1439
    %v1443 = vclz %v1442
    %v1444 = vsub.s32 %v1443, 2
    %vm1445 = vcmp.gt.s32.totalorder 0, %v1444
    %v1446 = vsel %vm1445, 0, %v1444
    %v1447 = vsub.s32 32, %v1446
    %v1448 = vshll.u32 %v1439, %v1446
    %v1449 = vshrl.u32 %v1431, %v1447
    %v1450 = vor.u32 %v1448, %v1449
    %v1451 = vsub.s32 4294967266, %v1446
    %v1452 = vadd.s32 %v1451, 127
    %v1453 = vshll.u32 %v1452, 23
    %v1454 = vor.u32 4788187, %v1453
    %v1455 = vand.u32 2147483647, %v1454
    %v1457 = vcvt.s32.f32 %v1450
    %v1458 = vmul.f32 %v1457, %v1455
    %v1459 = vxor.u32 %v1458, 2147483648
    %v1460 = vsel %vm1377, %v1459, %v1458
    %v1461 = vsub.s32 4, %v1437
    %v1462 = vsel %vm1377, %v1461, %v1437
    %v1463 = vsel %vm1376, %v1270, %v1460
    %v1464 = vsel %vm1376, 0, %v1462
    %v1465 = vcosq.f32.pop %v1463
    %v1466 = vsinq.f32.pop %v1463
    %vm1467 = vweird.f32 %v1270
    %v1468 = vand.u32 %v1464, 3
    %vm1469 = vcmp.lt.s32.totalorder %v1468, 2
    %vm1470 = vcmp.eq.s32.totalorder %v1468, 0
    %v1471 = vxor.u32 %v1466, 2147483648
    %v1472 = vsel %vm1470, %v1465, %v1471
    %vm1473 = vcmp.eq.s32.totalorder %v1468, 2
    %v1474 = vxor.u32 %v1465, 2147483648
    %v1475 = vsel %vm1473, %v1474, %v1466
    %v1476 = vsel %vm1469, %v1472, %v1475
    %v1477 = vsel %vm1467, nan, %v1476
    %v1478 = vand.u32 2147483647, %v1271
    %vm1479 = vcmp.le.f32.partialorder %v1478, 0.7853982
    %vm1480 = vcmp.lt.s32.totalorder %v1271, 0
    %v1481 = vand.u32 %v1271, 2139095040
    %v1482 = vshrl.u32 %v1481, 23
    %v1483 = vsub.s32 %v1482, 127
    %v1484 = vand.u32 2147483647, %v1271
    %v1485 = vand.u32 %v1484, 8388607
    %v1486 = vor.u32 %v1485, 8388608
    %v1487 = vsub.s32 0, %v1486
    %v1488 = vadd.s32 %v1483, 1
    %vm1489 = vcmp.gt.s32.totalorder %v1488, 0
    %v1490 = vsel %vm1489, %v1488, 0
    %v1491 = vshrl.u32 %v1490, 5
    %v1492 = vand.u32 %v1490, 31
    %v1493 = vsub.s32 32, %v1492
    %v1494 = vshrl.u32 683565275, %v1493
    %v1495 = vshll.u32 683565275, %v1492
    %v1496 = vshrl.u32 2475754826, %v1493
    %v1497 = vor.u32 %v1495, %v1496
    %v1498 = vshll.u32 2475754826, %v1492
    %v1499 = vshrl.u32 2131351028, %v1493
    %v1500 = vor.u32 %v1498, %v1499
    %v1501 = vshll.u32 2131351028, %v1492
    %v1502 = vshrl.u32 2102212464, %v1493
    %v1503 = vor.u32 %v1501, %v1502
    %v1504 = vshll.u32 2102212464, %v1492
    %v1505 = vshrl.u32 920167782, %v1493
    %v1506 = vor.u32 %v1504, %v1505
    %v1507 = vshll.u32 920167782, %v1492
    %v1508 = vshrl.u32 1326507024, %v1493
    %v1509 = vor.u32 %v1507, %v1508
    %vm1510 = vcmp.lt.s32.totalorder %v1491, 1
    %vm1511 = vcmp.lt.s32.totalorder %v1491, 2
    %vm1512 = vcmp.lt.s32.totalorder %v1491, 3
    %vm1513 = vcmp.lt.s32.totalorder %v1491, 4
    %v1514 = vsel %vm1510, %v1494, %v1497
    %v1515 = vsel %vm1513, %v1503, 2102212464
    %v1516 = vsel %vm1512, %v1500, %v1515
    %v1517 = vsel %vm1511, %v1514, %v1516
    %v1518 = vsel %vm1510, %v1497, %v1500
    %v1519 = vsel %vm1513, %v1506, 920167782
    %v1520 = vsel %vm1512, %v1503, %v1519
    %v1521 = vsel %vm1511, %v1518, %v1520
    %v1522 = vsel %vm1510, %v1500, %v1503
    %v1523 = vsel %vm1513, %v1509, 1326507024
    %v1524 = vsel %vm1512, %v1506, %v1523
    %v1525 = vsel %vm1511, %v1522, %v1524
    %v1526 = vshll.u32 %v1486, 8
    %v1527 = vmul.u32.u64.compose %v1526, %v1525
    %v1528 = vextract.low.u32 %v1527
    %v1529 = vextract.high.u32 %v1527
    %v1530 = vmul.u32.u64.compose %v1526, %v1521
    %v1531 = vextract.low.u32 %v1530
    %v1532 = vextract.high.u32 %v1530
    %v1533 = vmul.u32 %v1526, %v1517
    %v1534 = vadd.s32 %v1529, %v1531
    %vm1535 = vc.u32 %v1529, %v1531
    %v1536 = vadd.s32 %v1532, 1
    %v1537 = vsel %vm1535, %v1536, %v1532
    %v1538 = vadd.s32 %v1533, %v1537
    %v1539 = vadd.s32 %v1538, 536870912
    %v1540 = vshrl.u32 %v1539, 30
    %v1541 = vshll.u32 %v1540, 30
    %v1542 = vsub.s32 %v1538, %v1541
    %vm1543 = vcmp.lt.s32.totalorder %v1542, 0
    %v1544 = vsub.s32 0, %v1542
    %v1545 = vsel %vm1543, %v1544, %v1542
    %v1546 = vclz %v1545
    %v1547 = vsub.s32 %v1546, 2
    %vm1548 = vcmp.gt.s32.totalorder 0, %v1547
    %v1549 = vsel %vm1548, 0, %v1547
    %v1550 = vsub.s32 32, %v1549
    %v1551 = vshll.u32 %v1542, %v1549
    %v1552 = vshrl.u32 %v1534, %v1550
    %v1553 = vor.u32 %v1551, %v1552
    %v1554 = vsub.s32 4294967266, %v1549
    %v1555 = vadd.s32 %v1554, 127
    %v1556 = vshll.u32 %v1555, 23
    %v1557 = vor.u32 4788187, %v1556
    %v1558 = vand.u32 2147483647, %v1557
    %v1560 = vcvt.s32.f32 %v1553
    %v1561 = vmul.f32 %v1560, %v1558
    %v1562 = vxor.u32 %v1561, 2147483648
    %v1563 = vsel %vm1480, %v1562, %v1561
    %v1564 = vsub.s32 4, %v1540
    %v1565 = vsel %vm1480, %v1564, %v1540
    %v1566 = vsel %vm1479, %v1271, %v1563
    %v1567 = vsel %vm1479, 0, %v1565
    %v1568 = vcosq.f32.pop %v1566
    %v1569 = vsinq.f32.pop %v1566
    %vm1570 = vweird.f32 %v1271
    %v1571 = vand.u32 %v1567, 3
    %vm1572 = vcmp.lt.s32.totalorder %v1571, 2
    %vm1573 = vcmp.eq.s32.totalorder %v1571, 0
    %v1574 = vxor.u32 %v1569, 2147483648
    %v1575 = vsel %vm1573, %v1568, %v1574
    %vm1576 = vcmp.eq.s32.totalorder %v1571, 2
    %v1577 = vxor.u32 %v1568, 2147483648
    %v1578 = vsel %vm1576, %v1577, %v1569
    %v1579 = vsel %vm1572, %v1575, %v1578
    %v1580 = vsel %vm1570, nan, %v1579
    %v1581 = vsub.f32 1.0, %v1374
    %v1582 = vsub.f32 1.0, %v1477
    %v1583 = vsub.f32 1.0, %v1580
    %v1584 = vmul.f32 %v1581, 0.15915494
    %v1585 = vmul.f32 %v1582, 0.15915494
    %v1586 = vmul.f32 %v1583, 0.15915494
    %vm1587 = vcmp.lt.s32.totalorder %v21, 360
    %vm1588 = vcmp.lt.s32.totalorder %v1260, 360
    %vm1589 = vcmp.lt.s32.totalorder %v1261, 360
    %v1590 = vmul.f32 %v1584, 1.442695
    %v1591 = vpow.pop %v1590
    %v1592 = vmul.f32 %v1585, 1.442695
    %v1593 = vpow.pop %v1592
    %v1594 = vmul.f32 %v1586, 1.442695
    %v1595 = vpow.pop %v1594
    %v1596 = vsel %vm1587, %v1591, 0.0
    %v1597 = vsel %vm1588, %v1593, 0.0
    %v1598 = vsel %vm1589, %v1595, 0.0
    %v1599 = vadd.f32 %v1596, %v1597
    %v1600 = vadd.f32 %v1599, %v1598
    %1601 = vadd.xlane.f32.xlu0 %v1600
    %v1602 = vpop.xlane.xlu0 %1601
    %v1603 = vrcp.pop %v1602
    %v1604 = vmul.f32 %v1602, %v1603
    %v1605 = vsub.f32 2.0, %v1604
    %v1606 = vmul.f32 %v1603, %v1605
    %v1607 = vmul.f32 %v1596, %v1606
    %v1608 = vmul.f32 %v1597, %v1606
    %v1609 = vmul.f32 %v1598, %v1606
    %v1613 = vcombine.low %v1607, %v1608
    %v1615 = vunpack.c.l.s4 1966171168
    %v1616 = vunpack.c.0.s8 %v1615
    %v1617 = vlaneseq
    %v1618 = vshrl.u32 %v1617, 7
    %v1619 = vsub.s32 %v1616, %v1618
    %v1620 = vrot.slane %v1613, %v1619
    %v1622 = vunpack.c.l.s4 1966171168
    %v1623 = vunpack.c.0.s8 %v1622
    %v1624 = vlaneseq
    %v1625 = vshrl.u32 %v1624, 7
    %v1626 = vsub.s32 %v1623, %v1625
    %v1627 = vrot.slane %v1609, %v1626
    %v1628 = vcombine.low %v1620, %v1627
    %v1630 = vunpack.c.l.s4 1966171168
    %v1631 = vunpack.c.0.s8 %v1630
    %v1632 = vlaneseq
    %v1633 = vshrl.u32 %v1632, 7
    %v1634 = vsub.s32 %v1631, %v1633
    %v1635 = vrot.slane %v1628, %v1634
    %v1637 = vlaneseq
    %vm1638 = vcmp.ge.s32.totalorder %v1637, 0
    %vm1639 = vcmp.lt.s32.totalorder %v1637, 384
    %vm1640 = vmand %vm1638, %vm1639
    %1641 = vst.msk [vmem:[#allocation2] sm:$0x7] %vm1640, %v1635
    // Predicated region
    $region6: #{step.1} parent=1 // pred_check
      _
    $region7: #{step.1} parent=1 // pred_check_branch
      %1643 = sbr.rel (0) target = $region9
    $region8: #{step.1} parent=1 // pred_region
      %s1645 = ssub.s32 48, 48
      %1646 = vsyncadd [#allocation3], %s1645
      %s1648 = sshll.u32 [#allocation2], 4
      %s1649 = int_to_ptr.vmem [resolvable:$true] %s1648
      %1651 = dma.vmem_to_hbm [thread:$0]  %s1649, 48, %s1, [#allocation3]
    $region9: #{step.1} parent=1 // pred_fallthru
      _
    // Predicated region
    $region10: #{step.1} parent=1 // pred_check
      _
    $region11: #{step.1} parent=1 // pred_check_branch
      %1653 = sbr.rel (0) target = $region13
    $region12: #{step.1} parent=1 // pred_region
      _
    $region13: #{step.1} parent=1 // pred_fallthru
      _
    // Predicated region
    $region14: #{step.1} parent=1 // pred_check
      _
    $region15: #{step.1} parent=1 // pred_check_branch
      %1655 = sbr.rel (0) target = $region17
    $region16: #{step.1} parent=1 // pred_region
      %1656 = dma.done [#allocation3], 48
    $region17: #{step.1} parent=1 // pred_fallthru
      _
    // Predicated region
    $region18: #{step.1} parent=1 // pred_check
      _
    $region19: #{step.1} parent=1 // pred_check_branch
      %1658 = sbr.rel (0) target = $region21
    $region20: #{step.1} parent=1 // pred_region
      _
    $region21: #{step.1} parent=1 // pred_fallthru
      _
    %1659 = vsyncpa [#allocation3], 1

</llo_original>
